<compile_context>
chip_gen: v5e
topology: v5e:2x2
jax: 0.10.0
libtpu: 0.0.40
codegen_flags: <defaults>
</compile_context>

<pallas_src>
import functools

import jax
import jax.numpy as jnp
from jax.experimental import pallas as pl
from jax.experimental.pallas import tpu as pltpu


def _round_up(x, m):
    return ((x + m - 1) // m) * m


def _vt_classifier_kernel(x_ref, wp_ref, bp_ref, w2_ref, bl_ref, o_ref, *,
                          n_emb, tb):
    # x_ref : (1, V, E*TB)  pre-blocked bert output, column order e*TB + b
    # wp_ref: (P, V)        pooler weight
    # bp_ref: (P, 1)        pooler bias (broadcast over columns)
    # w2_ref: (E, NTp, P)   final linear weight, w2[e, t, k] == Wl[t, e*P + k]
    #                       (zero-padded to NTp target rows)
    # bl_ref: (NTp, 1)      final linear bias (zero-padded)
    # o_ref : (NTp, TB)     logits; batch along the 128-lane axis (lane-dense)
    x = x_ref[0]                                                    # (V, E*TB)

    # Stage 1: pooler as one MXU matmul over the whole (E*TB)-wide block.
    pooled = jnp.dot(wp_ref[...], x,
                     preferred_element_type=jnp.float32)            # (P, E*TB)
    # bias + dropout(eval)=identity + ReLU  (VPU)
    r = jnp.maximum(pooled + bp_ref[...], 0.0)                      # (P, E*TB)

    # Stage 2: final linear. Contract over (e, k) with E lane-aligned MXU dots:
    #   y[t, b] = sum_e  W2[e] (NTp, P)  @  r[:, e*TB:(e+1)*TB] (P, TB)
    acc = jnp.zeros(o_ref.shape, jnp.float32)                       # (NTp, TB)
    for e in range(n_emb):                       # static unroll (E is small)
        r_e = r[:, e * tb:(e + 1) * tb]          # 128-aligned lane slice
        acc = acc + jnp.dot(w2_ref[e], r_e,
                            preferred_element_type=jnp.float32)
    o_ref[...] = (acc + bl_ref[...]).astype(o_ref.dtype)


def vt_classifier(x, wp, bp, wl, bl, n_targets):
    """x: (B, V, E) bert output. Returns (B,) if n_targets == 1 else (B, n_targets)."""
    B, V, E = x.shape
    P = wp.shape[0]                       # pooler width, fixed to 10 in the module
    NT = n_targets
    NTp = _round_up(NT, 8)                # pad targets to a full sublane tile

    # Batch tiling: batch sits on the 128-lane axis inside the kernel.
    B128 = _round_up(max(B, 1), 128)
    TB = min(B128, 512)
    B_pad = _round_up(B128, TB)
    NB = B_pad // TB

    # ---- layout plumbing (plain JAX / XLA, outside the kernel) ----
    xp = jnp.pad(x, ((0, B_pad - B), (0, 0), (0, 0)))
    # (B_pad, V, E) -> (NB, V, E*TB) with column order  e*TB + b_local
    x_blk = (xp.transpose(1, 2, 0)                 # (V, E, B_pad)
               .reshape(V, E, NB, TB)
               .transpose(2, 0, 1, 3)              # (NB, V, E, TB)
               .reshape(NB, V, E * TB))

    bp_col = bp.reshape(P, 1)
    # Match torch .view(-1, 10*E):  flat[b, e*P + k] = pooled[b, e, k]
    # => w2[e, t, k] = Wl[t, e*P + k]
    w2 = wl.reshape(NT, E, P).transpose(1, 0, 2)   # (E, NT, P)
    w2 = jnp.pad(w2, ((0, 0), (0, NTp - NT), (0, 0)))
    bl_col = jnp.pad(bl.reshape(NT, 1), ((0, NTp - NT), (0, 0)))

    kernel = functools.partial(_vt_classifier_kernel, n_emb=E, tb=TB)
    out = pl.pallas_call(
        kernel,
        out_shape=jax.ShapeDtypeStruct((NTp, B_pad), x.dtype),
        grid=(NB,),
        in_specs=[
            pl.BlockSpec((1, V, E * TB), lambda i: (i, 0, 0)),   # x block
            pl.BlockSpec((P, V), lambda i: (0, 0)),              # wp (resident)
            pl.BlockSpec((P, 1), lambda i: (0, 0)),              # bp (resident)
            pl.BlockSpec((E, NTp, P), lambda i: (0, 0, 0)),      # w2 (resident)
            pl.BlockSpec((NTp, 1), lambda i: (0, 0)),            # bl (resident)
        ],
        out_specs=pl.BlockSpec((NTp, TB), lambda i: (0, i)),     # lane-dense
        compiler_params=pltpu.CompilerParams(
            dimension_semantics=("parallel",)),
    )(x_blk, wp, bp_col, w2, bl_col)

    y = out[:NT, :B]                     # drop target / batch padding
    if n_targets == 1:
        return y.reshape(-1)             # torch .flatten(0, -1)
    return y.T                           # (B, NT)


def _reference(x, wp, bp, wl, bl, n_targets):
    B = x.shape[0]
    pooled = jnp.einsum("bve,kv->bek", x, wp,
                        precision=jax.lax.Precision.HIGHEST) + bp   # (B, E, 10)
    flat = pooled.reshape(B, -1)                                    # .view(-1, 10*E)
    r = jnp.maximum(flat, 0.0)
    y = jnp.dot(r, wl.T, precision=jax.lax.Precision.HIGHEST) + bl
    if n_targets == 1:
        return y.reshape(-1)
    return y


if __name__ == "__main__":
    # Small shapes consistent with the module:
    #   batch=2, max_visits=8, embedding_dim=32, n_targets=1
    B, V, E, NT = 2, 8, 32, 1
    key = jax.random.PRNGKey(0)
    kx, kwp, kbp, kwl, kbl = jax.random.split(key, 5)

    x = jax.random.normal(kx, (B, V, E), dtype=jnp.float32)   # bert output stand-in
    wp = jax.random.uniform(kwp, (10, V), jnp.float32, -1.0, 1.0) / jnp.sqrt(V)
    bp = jax.random.uniform(kbp, (10,), jnp.float32, -1.0, 1.0) / jnp.sqrt(V)
    wl = jax.random.uniform(kwl, (NT, 10 * E), jnp.float32, -1.0, 1.0) / jnp.sqrt(10 * E)
    bl = jax.random.uniform(kbl, (NT,), jnp.float32, -1.0, 1.0) / jnp.sqrt(10 * E)

    y = vt_classifier(x, wp, bp, wl, bl, NT)
    y = jax.block_until_ready(y)

    y_ref = _reference(x, wp, bp, wl, bl, NT)
    assert y.shape == y_ref.shape, (y.shape, y_ref.shape)
    assert jnp.allclose(y, y_ref, atol=1e-3, rtol=1e-3), (y, y_ref)

    print("KERNEL_OK")
</pallas_src>

<mosaic_0001>
module attributes {stable_mosaic.version = 11 : i64} {
  func.func @_vt_classifier_kernel(%arg0: i32, %arg1: memref<1x8x4096xf32, #tpu.memory_space<vmem>>, %arg2: memref<10x8xf32, #tpu.memory_space<vmem>>, %arg3: memref<10x1xf32, #tpu.memory_space<vmem>>, %arg4: memref<32x8x10xf32, #tpu.memory_space<vmem>>, %arg5: memref<8x1xf32, #tpu.memory_space<vmem>>, %arg6: memref<8x128xf32, #tpu.memory_space<vmem>>) attributes {dimension_semantics = [#tpu.dimension_semantics<parallel>], iteration_bounds = array<i64: 1>, scalar_prefetch = 0 : i64, scratch_operands = 0 : i64, tpu.core_type = #tpu.core_type<tc>, window_params = [{transform_indices = @transform_0, window_bounds = array<i64: 1, 8, 4096>}, {pipeline_mode = #tpu.pipeline_mode<synchronous>, transform_indices = @transform_1, window_bounds = array<i64: 10, 8>}, {pipeline_mode = #tpu.pipeline_mode<synchronous>, transform_indices = @transform_2, window_bounds = array<i64: 10, 1>}, {pipeline_mode = #tpu.pipeline_mode<synchronous>, transform_indices = @transform_3, window_bounds = array<i64: 32, 8, 10>}, {pipeline_mode = #tpu.pipeline_mode<synchronous>, transform_indices = @transform_4, window_bounds = array<i64: 8, 1>}, {transform_indices = @transform_5, window_bounds = array<i64: 8, 128>}]} {
    %c0 = arith.constant 0 : index
    %c0_0 = arith.constant 0 : index
    %c0_1 = arith.constant 0 : index
    %0 = vector.load %arg1[%c0, %c0_0, %c0_1] : memref<1x8x4096xf32, #tpu.memory_space<vmem>>, vector<1x8x4096xf32>
    %1 = vector.shape_cast %0 : vector<1x8x4096xf32> to vector<8x4096xf32>
    %c0_2 = arith.constant 0 : index
    %c0_3 = arith.constant 0 : index
    %2 = vector.load %arg2[%c0_2, %c0_3] : memref<10x8xf32, #tpu.memory_space<vmem>>, vector<10x8xf32>
    %cst = arith.constant dense<0.000000e+00> : vector<10x4096xf32>
    %3 = tpu.matmul %2, %1, %cst {dimension_numbers = #tpu.dot_dimension_numbers<[1], [0], [0], [1], [0, 0, 1, 1], [], []>} : vector<10x8xf32>, vector<8x4096xf32>, vector<10x4096xf32> -> vector<10x4096xf32>
    %c0_4 = arith.constant 0 : index
    %c0_5 = arith.constant 0 : index
    %4 = vector.load %arg3[%c0_4, %c0_5] : memref<10x1xf32, #tpu.memory_space<vmem>>, vector<10x1xf32>
    %5 = vector.broadcast %4 : vector<10x1xf32> to vector<10x4096xf32>
    %6 = arith.addf %3, %5 : vector<10x4096xf32>
    %cst_6 = arith.constant 0.000000e+00 : f32
    %7 = vector.broadcast %cst_6 : f32 to vector<10x4096xf32>
    %8 = arith.maximumf %6, %7 : vector<10x4096xf32>
    %cst_7 = arith.constant 0.000000e+00 : f32
    %9 = vector.broadcast %cst_7 : f32 to vector<8x128xf32>
    %10 = vector.extract_strided_slice %8 {offsets = [0, 0], sizes = [10, 128], strides = [1, 1]} : vector<10x4096xf32> to vector<10x128xf32>
    %c0_8 = arith.constant 0 : index
    %c0_9 = arith.constant 0 : index
    %c0_10 = arith.constant 0 : index
    %11 = vector.load %arg4[%c0_8, %c0_9, %c0_10] : memref<32x8x10xf32, #tpu.memory_space<vmem>>, vector<1x8x10xf32>
    %12 = vector.shape_cast %11 : vector<1x8x10xf32> to vector<8x10xf32>
    %cst_11 = arith.constant dense<0.000000e+00> : vector<8x128xf32>
    %13 = tpu.matmul %12, %10, %cst_11 {dimension_numbers = #tpu.dot_dimension_numbers<[1], [0], [0], [1], [0, 0, 1, 1], [], []>} : vector<8x10xf32>, vector<10x128xf32>, vector<8x128xf32> -> vector<8x128xf32>
    %14 = arith.addf %9, %13 : vector<8x128xf32>
    %15 = vector.extract_strided_slice %8 {offsets = [0, 128], sizes = [10, 128], strides = [1, 1]} : vector<10x4096xf32> to vector<10x128xf32>
    %c1 = arith.constant 1 : index
    %c0_12 = arith.constant 0 : index
    %c0_13 = arith.constant 0 : index
    %16 = vector.load %arg4[%c1, %c0_12, %c0_13] : memref<32x8x10xf32, #tpu.memory_space<vmem>>, vector<1x8x10xf32>
    %17 = vector.shape_cast %16 : vector<1x8x10xf32> to vector<8x10xf32>
    %cst_14 = arith.constant dense<0.000000e+00> : vector<8x128xf32>
    %18 = tpu.matmul %17, %15, %cst_14 {dimension_numbers = #tpu.dot_dimension_numbers<[1], [0], [0], [1], [0, 0, 1, 1], [], []>} : vector<8x10xf32>, vector<10x128xf32>, vector<8x128xf32> -> vector<8x128xf32>
    %19 = arith.addf %14, %18 : vector<8x128xf32>
    %20 = vector.extract_strided_slice %8 {offsets = [0, 256], sizes = [10, 128], strides = [1, 1]} : vector<10x4096xf32> to vector<10x128xf32>
    %c2 = arith.constant 2 : index
    %c0_15 = arith.constant 0 : index
    %c0_16 = arith.constant 0 : index
    %21 = vector.load %arg4[%c2, %c0_15, %c0_16] : memref<32x8x10xf32, #tpu.memory_space<vmem>>, vector<1x8x10xf32>
    %22 = vector.shape_cast %21 : vector<1x8x10xf32> to vector<8x10xf32>
    %cst_17 = arith.constant dense<0.000000e+00> : vector<8x128xf32>
    %23 = tpu.matmul %22, %20, %cst_17 {dimension_numbers = #tpu.dot_dimension_numbers<[1], [0], [0], [1], [0, 0, 1, 1], [], []>} : vector<8x10xf32>, vector<10x128xf32>, vector<8x128xf32> -> vector<8x128xf32>
    %24 = arith.addf %19, %23 : vector<8x128xf32>
    %25 = vector.extract_strided_slice %8 {offsets = [0, 384], sizes = [10, 128], strides = [1, 1]} : vector<10x4096xf32> to vector<10x128xf32>
    %c3 = arith.constant 3 : index
    %c0_18 = arith.constant 0 : index
    %c0_19 = arith.constant 0 : index
    %26 = vector.load %arg4[%c3, %c0_18, %c0_19] : memref<32x8x10xf32, #tpu.memory_space<vmem>>, vector<1x8x10xf32>
    %27 = vector.shape_cast %26 : vector<1x8x10xf32> to vector<8x10xf32>
    %cst_20 = arith.constant dense<0.000000e+00> : vector<8x128xf32>
    %28 = tpu.matmul %27, %25, %cst_20 {dimension_numbers = #tpu.dot_dimension_numbers<[1], [0], [0], [1], [0, 0, 1, 1], [], []>} : vector<8x10xf32>, vector<10x128xf32>, vector<8x128xf32> -> vector<8x128xf32>
    %29 = arith.addf %24, %28 : vector<8x128xf32>
    %30 = vector.extract_strided_slice %8 {offsets = [0, 512], sizes = [10, 128], strides = [1, 1]} : vector<10x4096xf32> to vector<10x128xf32>
    %c4 = arith.constant 4 : index
    %c0_21 = arith.constant 0 : index
    %c0_22 = arith.constant 0 : index
    %31 = vector.load %arg4[%c4, %c0_21, %c0_22] : memref<32x8x10xf32, #tpu.memory_space<vmem>>, vector<1x8x10xf32>
    %32 = vector.shape_cast %31 : vector<1x8x10xf32> to vector<8x10xf32>
    %cst_23 = arith.constant dense<0.000000e+00> : vector<8x128xf32>
    %33 = tpu.matmul %32, %30, %cst_23 {dimension_numbers = #tpu.dot_dimension_numbers<[1], [0], [0], [1], [0, 0, 1, 1], [], []>} : vector<8x10xf32>, vector<10x128xf32>, vector<8x128xf32> -> vector<8x128xf32>
    %34 = arith.addf %29, %33 : vector<8x128xf32>
    %35 = vector.extract_strided_slice %8 {offsets = [0, 640], sizes = [10, 128], strides = [1, 1]} : vector<10x4096xf32> to vector<10x128xf32>
    %c5 = arith.constant 5 : index
    %c0_24 = arith.constant 0 : index
    %c0_25 = arith.constant 0 : index
    %36 = vector.load %arg4[%c5, %c0_24, %c0_25] : memref<32x8x10xf32, #tpu.memory_space<vmem>>, vector<1x8x10xf32>
    %37 = vector.shape_cast %36 : vector<1x8x10xf32> to vector<8x10xf32>
    %cst_26 = arith.constant dense<0.000000e+00> : vector<8x128xf32>
    %38 = tpu.matmul %37, %35, %cst_26 {dimension_numbers = #tpu.dot_dimension_numbers<[1], [0], [0], [1], [0, 0, 1, 1], [], []>} : vector<8x10xf32>, vector<10x128xf32>, vector<8x128xf32> -> vector<8x128xf32>
    %39 = arith.addf %34, %38 : vector<8x128xf32>
    %40 = vector.extract_strided_slice %8 {offsets = [0, 768], sizes = [10, 128], strides = [1, 1]} : vector<10x4096xf32> to vector<10x128xf32>
    %c6 = arith.constant 6 : index
    %c0_27 = arith.constant 0 : index
    %c0_28 = arith.constant 0 : index
    %41 = vector.load %arg4[%c6, %c0_27, %c0_28] : memref<32x8x10xf32, #tpu.memory_space<vmem>>, vector<1x8x10xf32>
    %42 = vector.shape_cast %41 : vector<1x8x10xf32> to vector<8x10xf32>
    %cst_29 = arith.constant dense<0.000000e+00> : vector<8x128xf32>
    %43 = tpu.matmul %42, %40, %cst_29 {dimension_numbers = #tpu.dot_dimension_numbers<[1], [0], [0], [1], [0, 0, 1, 1], [], []>} : vector<8x10xf32>, vector<10x128xf32>, vector<8x128xf32> -> vector<8x128xf32>
    %44 = arith.addf %39, %43 : vector<8x128xf32>
    %45 = vector.extract_strided_slice %8 {offsets = [0, 896], sizes = [10, 128], strides = [1, 1]} : vector<10x4096xf32> to vector<10x128xf32>
    %c7 = arith.constant 7 : index
    %c0_30 = arith.constant 0 : index
    %c0_31 = arith.constant 0 : index
    %46 = vector.load %arg4[%c7, %c0_30, %c0_31] : memref<32x8x10xf32, #tpu.memory_space<vmem>>, vector<1x8x10xf32>
    %47 = vector.shape_cast %46 : vector<1x8x10xf32> to vector<8x10xf32>
    %cst_32 = arith.constant dense<0.000000e+00> : vector<8x128xf32>
    %48 = tpu.matmul %47, %45, %cst_32 {dimension_numbers = #tpu.dot_dimension_numbers<[1], [0], [0], [1], [0, 0, 1, 1], [], []>} : vector<8x10xf32>, vector<10x128xf32>, vector<8x128xf32> -> vector<8x128xf32>
    %49 = arith.addf %44, %48 : vector<8x128xf32>
    %50 = vector.extract_strided_slice %8 {offsets = [0, 1024], sizes = [10, 128], strides = [1, 1]} : vector<10x4096xf32> to vector<10x128xf32>
    %c8 = arith.constant 8 : index
    %c0_33 = arith.constant 0 : index
    %c0_34 = arith.constant 0 : index
    %51 = vector.load %arg4[%c8, %c0_33, %c0_34] : memref<32x8x10xf32, #tpu.memory_space<vmem>>, vector<1x8x10xf32>
    %52 = vector.shape_cast %51 : vector<1x8x10xf32> to vector<8x10xf32>
    %cst_35 = arith.constant dense<0.000000e+00> : vector<8x128xf32>
    %53 = tpu.matmul %52, %50, %cst_35 {dimension_numbers = #tpu.dot_dimension_numbers<[1], [0], [0], [1], [0, 0, 1, 1], [], []>} : vector<8x10xf32>, vector<10x128xf32>, vector<8x128xf32> -> vector<8x128xf32>
    %54 = arith.addf %49, %53 : vector<8x128xf32>
    %55 = vector.extract_strided_slice %8 {offsets = [0, 1152], sizes = [10, 128], strides = [1, 1]} : vector<10x4096xf32> to vector<10x128xf32>
    %c9 = arith.constant 9 : index
    %c0_36 = arith.constant 0 : index
    %c0_37 = arith.constant 0 : index
    %56 = vector.load %arg4[%c9, %c0_36, %c0_37] : memref<32x8x10xf32, #tpu.memory_space<vmem>>, vector<1x8x10xf32>
    %57 = vector.shape_cast %56 : vector<1x8x10xf32> to vector<8x10xf32>
    %cst_38 = arith.constant dense<0.000000e+00> : vector<8x128xf32>
    %58 = tpu.matmul %57, %55, %cst_38 {dimension_numbers = #tpu.dot_dimension_numbers<[1], [0], [0], [1], [0, 0, 1, 1], [], []>} : vector<8x10xf32>, vector<10x128xf32>, vector<8x128xf32> -> vector<8x128xf32>
    %59 = arith.addf %54, %58 : vector<8x128xf32>
    %60 = vector.extract_strided_slice %8 {offsets = [0, 1280], sizes = [10, 128], strides = [1, 1]} : vector<10x4096xf32> to vector<10x128xf32>
    %c10 = arith.constant 10 : index
    %c0_39 = arith.constant 0 : index
    %c0_40 = arith.constant 0 : index
    %61 = vector.load %arg4[%c10, %c0_39, %c0_40] : memref<32x8x10xf32, #tpu.memory_space<vmem>>, vector<1x8x10xf32>
    %62 = vector.shape_cast %61 : vector<1x8x10xf32> to vector<8x10xf32>
    %cst_41 = arith.constant dense<0.000000e+00> : vector<8x128xf32>
    %63 = tpu.matmul %62, %60, %cst_41 {dimension_numbers = #tpu.dot_dimension_numbers<[1], [0], [0], [1], [0, 0, 1, 1], [], []>} : vector<8x10xf32>, vector<10x128xf32>, vector<8x128xf32> -> vector<8x128xf32>
    %64 = arith.addf %59, %63 : vector<8x128xf32>
    %65 = vector.extract_strided_slice %8 {offsets = [0, 1408], sizes = [10, 128], strides = [1, 1]} : vector<10x4096xf32> to vector<10x128xf32>
    %c11 = arith.constant 11 : index
    %c0_42 = arith.constant 0 : index
    %c0_43 = arith.constant 0 : index
    %66 = vector.load %arg4[%c11, %c0_42, %c0_43] : memref<32x8x10xf32, #tpu.memory_space<vmem>>, vector<1x8x10xf32>
    %67 = vector.shape_cast %66 : vector<1x8x10xf32> to vector<8x10xf32>
    %cst_44 = arith.constant dense<0.000000e+00> : vector<8x128xf32>
    %68 = tpu.matmul %67, %65, %cst_44 {dimension_numbers = #tpu.dot_dimension_numbers<[1], [0], [0], [1], [0, 0, 1, 1], [], []>} : vector<8x10xf32>, vector<10x128xf32>, vector<8x128xf32> -> vector<8x128xf32>
    %69 = arith.addf %64, %68 : vector<8x128xf32>
    %70 = vector.extract_strided_slice %8 {offsets = [0, 1536], sizes = [10, 128], strides = [1, 1]} : vector<10x4096xf32> to vector<10x128xf32>
    %c12 = arith.constant 12 : index
    %c0_45 = arith.constant 0 : index
    %c0_46 = arith.constant 0 : index
    %71 = vector.load %arg4[%c12, %c0_45, %c0_46] : memref<32x8x10xf32, #tpu.memory_space<vmem>>, vector<1x8x10xf32>
    %72 = vector.shape_cast %71 : vector<1x8x10xf32> to vector<8x10xf32>
    %cst_47 = arith.constant dense<0.000000e+00> : vector<8x128xf32>
    %73 = tpu.matmul %72, %70, %cst_47 {dimension_numbers = #tpu.dot_dimension_numbers<[1], [0], [0], [1], [0, 0, 1, 1], [], []>} : vector<8x10xf32>, vector<10x128xf32>, vector<8x128xf32> -> vector<8x128xf32>
    %74 = arith.addf %69, %73 : vector<8x128xf32>
    %75 = vector.extract_strided_slice %8 {offsets = [0, 1664], sizes = [10, 128], strides = [1, 1]} : vector<10x4096xf32> to vector<10x128xf32>
    %c13 = arith.constant 13 : index
    %c0_48 = arith.constant 0 : index
    %c0_49 = arith.constant 0 : index
    %76 = vector.load %arg4[%c13, %c0_48, %c0_49] : memref<32x8x10xf32, #tpu.memory_space<vmem>>, vector<1x8x10xf32>
    %77 = vector.shape_cast %76 : vector<1x8x10xf32> to vector<8x10xf32>
    %cst_50 = arith.constant dense<0.000000e+00> : vector<8x128xf32>
    %78 = tpu.matmul %77, %75, %cst_50 {dimension_numbers = #tpu.dot_dimension_numbers<[1], [0], [0], [1], [0, 0, 1, 1], [], []>} : vector<8x10xf32>, vector<10x128xf32>, vector<8x128xf32> -> vector<8x128xf32>
    %79 = arith.addf %74, %78 : vector<8x128xf32>
    %80 = vector.extract_strided_slice %8 {offsets = [0, 1792], sizes = [10, 128], strides = [1, 1]} : vector<10x4096xf32> to vector<10x128xf32>
    %c14 = arith.constant 14 : index
    %c0_51 = arith.constant 0 : index
    %c0_52 = arith.constant 0 : index
    %81 = vector.load %arg4[%c14, %c0_51, %c0_52] : memref<32x8x10xf32, #tpu.memory_space<vmem>>, vector<1x8x10xf32>
    %82 = vector.shape_cast %81 : vector<1x8x10xf32> to vector<8x10xf32>
    %cst_53 = arith.constant dense<0.000000e+00> : vector<8x128xf32>
    %83 = tpu.matmul %82, %80, %cst_53 {dimension_numbers = #tpu.dot_dimension_numbers<[1], [0], [0], [1], [0, 0, 1, 1], [], []>} : vector<8x10xf32>, vector<10x128xf32>, vector<8x128xf32> -> vector<8x128xf32>
    %84 = arith.addf %79, %83 : vector<8x128xf32>
    %85 = vector.extract_strided_slice %8 {offsets = [0, 1920], sizes = [10, 128], strides = [1, 1]} : vector<10x4096xf32> to vector<10x128xf32>
    %c15 = arith.constant 15 : index
    %c0_54 = arith.constant 0 : index
    %c0_55 = arith.constant 0 : index
    %86 = vector.load %arg4[%c15, %c0_54, %c0_55] : memref<32x8x10xf32, #tpu.memory_space<vmem>>, vector<1x8x10xf32>
    %87 = vector.shape_cast %86 : vector<1x8x10xf32> to vector<8x10xf32>
    %cst_56 = arith.constant dense<0.000000e+00> : vector<8x128xf32>
    %88 = tpu.matmul %87, %85, %cst_56 {dimension_numbers = #tpu.dot_dimension_numbers<[1], [0], [0], [1], [0, 0, 1, 1], [], []>} : vector<8x10xf32>, vector<10x128xf32>, vector<8x128xf32> -> vector<8x128xf32>
    %89 = arith.addf %84, %88 : vector<8x128xf32>
    %90 = vector.extract_strided_slice %8 {offsets = [0, 2048], sizes = [10, 128], strides = [1, 1]} : vector<10x4096xf32> to vector<10x128xf32>
    %c16 = arith.constant 16 : index
    %c0_57 = arith.constant 0 : index
    %c0_58 = arith.constant 0 : index
    %91 = vector.load %arg4[%c16, %c0_57, %c0_58] : memref<32x8x10xf32, #tpu.memory_space<vmem>>, vector<1x8x10xf32>
    %92 = vector.shape_cast %91 : vector<1x8x10xf32> to vector<8x10xf32>
    %cst_59 = arith.constant dense<0.000000e+00> : vector<8x128xf32>
    %93 = tpu.matmul %92, %90, %cst_59 {dimension_numbers = #tpu.dot_dimension_numbers<[1], [0], [0], [1], [0, 0, 1, 1], [], []>} : vector<8x10xf32>, vector<10x128xf32>, vector<8x128xf32> -> vector<8x128xf32>
    %94 = arith.addf %89, %93 : vector<8x128xf32>
    %95 = vector.extract_strided_slice %8 {offsets = [0, 2176], sizes = [10, 128], strides = [1, 1]} : vector<10x4096xf32> to vector<10x128xf32>
    %c17 = arith.constant 17 : index
    %c0_60 = arith.constant 0 : index
    %c0_61 = arith.constant 0 : index
    %96 = vector.load %arg4[%c17, %c0_60, %c0_61] : memref<32x8x10xf32, #tpu.memory_space<vmem>>, vector<1x8x10xf32>
    %97 = vector.shape_cast %96 : vector<1x8x10xf32> to vector<8x10xf32>
    %cst_62 = arith.constant dense<0.000000e+00> : vector<8x128xf32>
    %98 = tpu.matmul %97, %95, %cst_62 {dimension_numbers = #tpu.dot_dimension_numbers<[1], [0], [0], [1], [0, 0, 1, 1], [], []>} : vector<8x10xf32>, vector<10x128xf32>, vector<8x128xf32> -> vector<8x128xf32>
    %99 = arith.addf %94, %98 : vector<8x128xf32>
    %100 = vector.extract_strided_slice %8 {offsets = [0, 2304], sizes = [10, 128], strides = [1, 1]} : vector<10x4096xf32> to vector<10x128xf32>
    %c18 = arith.constant 18 : index
    %c0_63 = arith.constant 0 : index
    %c0_64 = arith.constant 0 : index
    %101 = vector.load %arg4[%c18, %c0_63, %c0_64] : memref<32x8x10xf32, #tpu.memory_space<vmem>>, vector<1x8x10xf32>
    %102 = vector.shape_cast %101 : vector<1x8x10xf32> to vector<8x10xf32>
    %cst_65 = arith.constant dense<0.000000e+00> : vector<8x128xf32>
    %103 = tpu.matmul %102, %100, %cst_65 {dimension_numbers = #tpu.dot_dimension_numbers<[1], [0], [0], [1], [0, 0, 1, 1], [], []>} : vector<8x10xf32>, vector<10x128xf32>, vector<8x128xf32> -> vector<8x128xf32>
    %104 = arith.addf %99, %103 : vector<8x128xf32>
    %105 = vector.extract_strided_slice %8 {offsets = [0, 2432], sizes = [10, 128], strides = [1, 1]} : vector<10x4096xf32> to vector<10x128xf32>
    %c19 = arith.constant 19 : index
    %c0_66 = arith.constant 0 : index
    %c0_67 = arith.constant 0 : index
    %106 = vector.load %arg4[%c19, %c0_66, %c0_67] : memref<32x8x10xf32, #tpu.memory_space<vmem>>, vector<1x8x10xf32>
    %107 = vector.shape_cast %106 : vector<1x8x10xf32> to vector<8x10xf32>
    %cst_68 = arith.constant dense<0.000000e+00> : vector<8x128xf32>
    %108 = tpu.matmul %107, %105, %cst_68 {dimension_numbers = #tpu.dot_dimension_numbers<[1], [0], [0], [1], [0, 0, 1, 1], [], []>} : vector<8x10xf32>, vector<10x128xf32>, vector<8x128xf32> -> vector<8x128xf32>
    %109 = arith.addf %104, %108 : vector<8x128xf32>
    %110 = vector.extract_strided_slice %8 {offsets = [0, 2560], sizes = [10, 128], strides = [1, 1]} : vector<10x4096xf32> to vector<10x128xf32>
    %c20 = arith.constant 20 : index
    %c0_69 = arith.constant 0 : index
    %c0_70 = arith.constant 0 : index
    %111 = vector.load %arg4[%c20, %c0_69, %c0_70] : memref<32x8x10xf32, #tpu.memory_space<vmem>>, vector<1x8x10xf32>
    %112 = vector.shape_cast %111 : vector<1x8x10xf32> to vector<8x10xf32>
    %cst_71 = arith.constant dense<0.000000e+00> : vector<8x128xf32>
    %113 = tpu.matmul %112, %110, %cst_71 {dimension_numbers = #tpu.dot_dimension_numbers<[1], [0], [0], [1], [0, 0, 1, 1], [], []>} : vector<8x10xf32>, vector<10x128xf32>, vector<8x128xf32> -> vector<8x128xf32>
    %114 = arith.addf %109, %113 : vector<8x128xf32>
    %115 = vector.extract_strided_slice %8 {offsets = [0, 2688], sizes = [10, 128], strides = [1, 1]} : vector<10x4096xf32> to vector<10x128xf32>
    %c21 = arith.constant 21 : index
    %c0_72 = arith.constant 0 : index
    %c0_73 = arith.constant 0 : index
    %116 = vector.load %arg4[%c21, %c0_72, %c0_73] : memref<32x8x10xf32, #tpu.memory_space<vmem>>, vector<1x8x10xf32>
    %117 = vector.shape_cast %116 : vector<1x8x10xf32> to vector<8x10xf32>
    %cst_74 = arith.constant dense<0.000000e+00> : vector<8x128xf32>
    %118 = tpu.matmul %117, %115, %cst_74 {dimension_numbers = #tpu.dot_dimension_numbers<[1], [0], [0], [1], [0, 0, 1, 1], [], []>} : vector<8x10xf32>, vector<10x128xf32>, vector<8x128xf32> -> vector<8x128xf32>
    %119 = arith.addf %114, %118 : vector<8x128xf32>
    %120 = vector.extract_strided_slice %8 {offsets = [0, 2816], sizes = [10, 128], strides = [1, 1]} : vector<10x4096xf32> to vector<10x128xf32>
    %c22 = arith.constant 22 : index
    %c0_75 = arith.constant 0 : index
    %c0_76 = arith.constant 0 : index
    %121 = vector.load %arg4[%c22, %c0_75, %c0_76] : memref<32x8x10xf32, #tpu.memory_space<vmem>>, vector<1x8x10xf32>
    %122 = vector.shape_cast %121 : vector<1x8x10xf32> to vector<8x10xf32>
    %cst_77 = arith.constant dense<0.000000e+00> : vector<8x128xf32>
    %123 = tpu.matmul %122, %120, %cst_77 {dimension_numbers = #tpu.dot_dimension_numbers<[1], [0], [0], [1], [0, 0, 1, 1], [], []>} : vector<8x10xf32>, vector<10x128xf32>, vector<8x128xf32> -> vector<8x128xf32>
    %124 = arith.addf %119, %123 : vector<8x128xf32>
    %125 = vector.extract_strided_slice %8 {offsets = [0, 2944], sizes = [10, 128], strides = [1, 1]} : vector<10x4096xf32> to vector<10x128xf32>
    %c23 = arith.constant 23 : index
    %c0_78 = arith.constant 0 : index
    %c0_79 = arith.constant 0 : index
    %126 = vector.load %arg4[%c23, %c0_78, %c0_79] : memref<32x8x10xf32, #tpu.memory_space<vmem>>, vector<1x8x10xf32>
    %127 = vector.shape_cast %126 : vector<1x8x10xf32> to vector<8x10xf32>
    %cst_80 = arith.constant dense<0.000000e+00> : vector<8x128xf32>
    %128 = tpu.matmul %127, %125, %cst_80 {dimension_numbers = #tpu.dot_dimension_numbers<[1], [0], [0], [1], [0, 0, 1, 1], [], []>} : vector<8x10xf32>, vector<10x128xf32>, vector<8x128xf32> -> vector<8x128xf32>
    %129 = arith.addf %124, %128 : vector<8x128xf32>
    %130 = vector.extract_strided_slice %8 {offsets = [0, 3072], sizes = [10, 128], strides = [1, 1]} : vector<10x4096xf32> to vector<10x128xf32>
    %c24 = arith.constant 24 : index
    %c0_81 = arith.constant 0 : index
    %c0_82 = arith.constant 0 : index
    %131 = vector.load %arg4[%c24, %c0_81, %c0_82] : memref<32x8x10xf32, #tpu.memory_space<vmem>>, vector<1x8x10xf32>
    %132 = vector.shape_cast %131 : vector<1x8x10xf32> to vector<8x10xf32>
    %cst_83 = arith.constant dense<0.000000e+00> : vector<8x128xf32>
    %133 = tpu.matmul %132, %130, %cst_83 {dimension_numbers = #tpu.dot_dimension_numbers<[1], [0], [0], [1], [0, 0, 1, 1], [], []>} : vector<8x10xf32>, vector<10x128xf32>, vector<8x128xf32> -> vector<8x128xf32>
    %134 = arith.addf %129, %133 : vector<8x128xf32>
    %135 = vector.extract_strided_slice %8 {offsets = [0, 3200], sizes = [10, 128], strides = [1, 1]} : vector<10x4096xf32> to vector<10x128xf32>
    %c25 = arith.constant 25 : index
    %c0_84 = arith.constant 0 : index
    %c0_85 = arith.constant 0 : index
    %136 = vector.load %arg4[%c25, %c0_84, %c0_85] : memref<32x8x10xf32, #tpu.memory_space<vmem>>, vector<1x8x10xf32>
    %137 = vector.shape_cast %136 : vector<1x8x10xf32> to vector<8x10xf32>
    %cst_86 = arith.constant dense<0.000000e+00> : vector<8x128xf32>
    %138 = tpu.matmul %137, %135, %cst_86 {dimension_numbers = #tpu.dot_dimension_numbers<[1], [0], [0], [1], [0, 0, 1, 1], [], []>} : vector<8x10xf32>, vector<10x128xf32>, vector<8x128xf32> -> vector<8x128xf32>
    %139 = arith.addf %134, %138 : vector<8x128xf32>
    %140 = vector.extract_strided_slice %8 {offsets = [0, 3328], sizes = [10, 128], strides = [1, 1]} : vector<10x4096xf32> to vector<10x128xf32>
    %c26 = arith.constant 26 : index
    %c0_87 = arith.constant 0 : index
    %c0_88 = arith.constant 0 : index
    %141 = vector.load %arg4[%c26, %c0_87, %c0_88] : memref<32x8x10xf32, #tpu.memory_space<vmem>>, vector<1x8x10xf32>
    %142 = vector.shape_cast %141 : vector<1x8x10xf32> to vector<8x10xf32>
    %cst_89 = arith.constant dense<0.000000e+00> : vector<8x128xf32>
    %143 = tpu.matmul %142, %140, %cst_89 {dimension_numbers = #tpu.dot_dimension_numbers<[1], [0], [0], [1], [0, 0, 1, 1], [], []>} : vector<8x10xf32>, vector<10x128xf32>, vector<8x128xf32> -> vector<8x128xf32>
    %144 = arith.addf %139, %143 : vector<8x128xf32>
    %145 = vector.extract_strided_slice %8 {offsets = [0, 3456], sizes = [10, 128], strides = [1, 1]} : vector<10x4096xf32> to vector<10x128xf32>
    %c27 = arith.constant 27 : index
    %c0_90 = arith.constant 0 : index
    %c0_91 = arith.constant 0 : index
    %146 = vector.load %arg4[%c27, %c0_90, %c0_91] : memref<32x8x10xf32, #tpu.memory_space<vmem>>, vector<1x8x10xf32>
    %147 = vector.shape_cast %146 : vector<1x8x10xf32> to vector<8x10xf32>
    %cst_92 = arith.constant dense<0.000000e+00> : vector<8x128xf32>
    %148 = tpu.matmul %147, %145, %cst_92 {dimension_numbers = #tpu.dot_dimension_numbers<[1], [0], [0], [1], [0, 0, 1, 1], [], []>} : vector<8x10xf32>, vector<10x128xf32>, vector<8x128xf32> -> vector<8x128xf32>
    %149 = arith.addf %144, %148 : vector<8x128xf32>
    %150 = vector.extract_strided_slice %8 {offsets = [0, 3584], sizes = [10, 128], strides = [1, 1]} : vector<10x4096xf32> to vector<10x128xf32>
    %c28 = arith.constant 28 : index
    %c0_93 = arith.constant 0 : index
    %c0_94 = arith.constant 0 : index
    %151 = vector.load %arg4[%c28, %c0_93, %c0_94] : memref<32x8x10xf32, #tpu.memory_space<vmem>>, vector<1x8x10xf32>
    %152 = vector.shape_cast %151 : vector<1x8x10xf32> to vector<8x10xf32>
    %cst_95 = arith.constant dense<0.000000e+00> : vector<8x128xf32>
    %153 = tpu.matmul %152, %150, %cst_95 {dimension_numbers = #tpu.dot_dimension_numbers<[1], [0], [0], [1], [0, 0, 1, 1], [], []>} : vector<8x10xf32>, vector<10x128xf32>, vector<8x128xf32> -> vector<8x128xf32>
    %154 = arith.addf %149, %153 : vector<8x128xf32>
    %155 = vector.extract_strided_slice %8 {offsets = [0, 3712], sizes = [10, 128], strides = [1, 1]} : vector<10x4096xf32> to vector<10x128xf32>
    %c29 = arith.constant 29 : index
    %c0_96 = arith.constant 0 : index
    %c0_97 = arith.constant 0 : index
    %156 = vector.load %arg4[%c29, %c0_96, %c0_97] : memref<32x8x10xf32, #tpu.memory_space<vmem>>, vector<1x8x10xf32>
    %157 = vector.shape_cast %156 : vector<1x8x10xf32> to vector<8x10xf32>
    %cst_98 = arith.constant dense<0.000000e+00> : vector<8x128xf32>
    %158 = tpu.matmul %157, %155, %cst_98 {dimension_numbers = #tpu.dot_dimension_numbers<[1], [0], [0], [1], [0, 0, 1, 1], [], []>} : vector<8x10xf32>, vector<10x128xf32>, vector<8x128xf32> -> vector<8x128xf32>
    %159 = arith.addf %154, %158 : vector<8x128xf32>
    %160 = vector.extract_strided_slice %8 {offsets = [0, 3840], sizes = [10, 128], strides = [1, 1]} : vector<10x4096xf32> to vector<10x128xf32>
    %c30 = arith.constant 30 : index
    %c0_99 = arith.constant 0 : index
    %c0_100 = arith.constant 0 : index
    %161 = vector.load %arg4[%c30, %c0_99, %c0_100] : memref<32x8x10xf32, #tpu.memory_space<vmem>>, vector<1x8x10xf32>
    %162 = vector.shape_cast %161 : vector<1x8x10xf32> to vector<8x10xf32>
    %cst_101 = arith.constant dense<0.000000e+00> : vector<8x128xf32>
    %163 = tpu.matmul %162, %160, %cst_101 {dimension_numbers = #tpu.dot_dimension_numbers<[1], [0], [0], [1], [0, 0, 1, 1], [], []>} : vector<8x10xf32>, vector<10x128xf32>, vector<8x128xf32> -> vector<8x128xf32>
    %164 = arith.addf %159, %163 : vector<8x128xf32>
    %165 = vector.extract_strided_slice %8 {offsets = [0, 3968], sizes = [10, 128], strides = [1, 1]} : vector<10x4096xf32> to vector<10x128xf32>
    %c31 = arith.constant 31 : index
    %c0_102 = arith.constant 0 : index
    %c0_103 = arith.constant 0 : index
    %166 = vector.load %arg4[%c31, %c0_102, %c0_103] : memref<32x8x10xf32, #tpu.memory_space<vmem>>, vector<1x8x10xf32>
    %167 = vector.shape_cast %166 : vector<1x8x10xf32> to vector<8x10xf32>
    %cst_104 = arith.constant dense<0.000000e+00> : vector<8x128xf32>
    %168 = tpu.matmul %167, %165, %cst_104 {dimension_numbers = #tpu.dot_dimension_numbers<[1], [0], [0], [1], [0, 0, 1, 1], [], []>} : vector<8x10xf32>, vector<10x128xf32>, vector<8x128xf32> -> vector<8x128xf32>
    %169 = arith.addf %164, %168 : vector<8x128xf32>
    %c0_105 = arith.constant 0 : index
    %c0_106 = arith.constant 0 : index
    %170 = vector.load %arg5[%c0_105, %c0_106] : memref<8x1xf32, #tpu.memory_space<vmem>>, vector<8x1xf32>
    %171 = vector.broadcast %170 : vector<8x1xf32> to vector<8x128xf32>
    %172 = arith.addf %169, %171 : vector<8x128xf32>
    %c0_107 = arith.constant 0 : index
    %c0_108 = arith.constant 0 : index
    %173 = vector.load %arg6[%c0_107, %c0_108] : memref<8x128xf32, #tpu.memory_space<vmem>>, vector<8x128xf32>
    tpu.vector_store %arg6[%c0_107, %c0_108], %172 {strides = array<i32>} : memref<8x128xf32, #tpu.memory_space<vmem>>, vector<8x128xf32>,
    return
  }
  func.func @transform_0(%arg0: i32) -> (i32, i32, i32) {
    %c0_i32 = arith.constant 0 : i32
    %c0_i32_0 = arith.constant 0 : i32
    %c0_i32_1 = arith.constant 0 : i32
    return %arg0, %c0_i32, %c0_i32_0 : i32, i32, i32
  }
  func.func @transform_1(%arg0: i32) -> (i32, i32) {
    %c0_i32 = arith.constant 0 : i32
    %c0_i32_0 = arith.constant 0 : i32
    %c0_i32_1 = arith.constant 0 : i32
    return %c0_i32, %c0_i32_0 : i32, i32
  }
  func.func @transform_2(%arg0: i32) -> (i32, i32) {
    %c0_i32 = arith.constant 0 : i32
    %c0_i32_0 = arith.constant 0 : i32
    %c0_i32_1 = arith.constant 0 : i32
    return %c0_i32, %c0_i32_0 : i32, i32
  }
  func.func @transform_3(%arg0: i32) -> (i32, i32, i32) {
    %c0_i32 = arith.constant 0 : i32
    %c0_i32_0 = arith.constant 0 : i32
    %c0_i32_1 = arith.constant 0 : i32
    %c0_i32_2 = arith.constant 0 : i32
    return %c0_i32, %c0_i32_0, %c0_i32_1 : i32, i32, i32
  }
  func.func @transform_4(%arg0: i32) -> (i32, i32) {
    %c0_i32 = arith.constant 0 : i32
    %c0_i32_0 = arith.constant 0 : i32
    %c0_i32_1 = arith.constant 0 : i32
    return %c0_i32, %c0_i32_0 : i32, i32
  }
  func.func @transform_5(%arg0: i32) -> (i32, i32) {
    %c0_i32 = arith.constant 0 : i32
    %c0_i32_0 = arith.constant 0 : i32
    return %c0_i32, %arg0 : i32, i32
  }
}

</mosaic_0001>

<llo_original>
// kernel: tpu_custom_call.1
$region0: #{tpu_custom_call.1}
  #allocation0 [shape = 'u32[]', space=smem, size = 0x4, offset = 0x4, fixed_abs, tag = 'smem constant byte address 0x4 - core index']
  #allocation1 [shape = 'u32[72,128]{1,0:T(1,128)}', space=vmem, size = 0x9000, scoped, tag = 'internal scratch']
  %s0 = inlined_call_operand.vmem [shape: f32[1,8,4096], index: 0, kind: input, shape index: {}]
  %s1 = inlined_call_operand.vmem [shape: f32[10,8], index: 1, kind: input, shape index: {}]
  %s2 = inlined_call_operand.vmem [shape: f32[10,1], index: 2, kind: input, shape index: {}]
  %s3 = inlined_call_operand.vmem [shape: f32[32,8,10], index: 3, kind: input, shape index: {}]
  %s4 = inlined_call_operand.vmem [shape: f32[8,1], index: 4, kind: input, shape index: {}]
  %s5 = inlined_call_operand.hbm [shape: f32[8,128], index: 5, kind: output, shape index: {}]
  %s6 = sld [smem:[#allocation0]]
  $region30: #{tpu_custom_call.1} parent=0
    _
  %s8 = ssub.s32 1, %s6
  %s9 = scalar_select 0, %s8, %s6
  $region1: #{tpu_custom_call.1} parent=0
    #allocation2 [shape = 'u8[4096]{0}', space=vmem, size = 0x1000, scoped, tag = 'output window, operand 0, single buffered']
    #allocation3 [shape = 's32[1]{0}', space=sflag, size = 0x4, scoped, tag = 'scoped memory for tpu_custom_call.1']
    %10 = vsyncpa [#allocation3], 0
    // Predicated region
    $region2: #{tpu_custom_call.1} parent=1 // pred_check
      _
    $region3: #{tpu_custom_call.1} parent=1 // pred_check_branch
      %12 = sbr.rel (0) target = $region5
    $region4: #{tpu_custom_call.1} parent=1 // pred_region
      _
    $region5: #{tpu_custom_call.1} parent=1 // pred_fallthru
      _
    // Predicated region
    $region6: #{tpu_custom_call.1} parent=1 // pred_check
      _
    $region7: #{tpu_custom_call.1} parent=1 // pred_check_branch
      %14 = sbr.rel (0) target = $region9
    $region8: #{tpu_custom_call.1} parent=1 // pred_region
      _
    $region9: #{tpu_custom_call.1} parent=1 // pred_fallthru
      _
    // Predicated region
    $region10: #{tpu_custom_call.1} parent=1 // pred_check
      _
    $region11: #{tpu_custom_call.1} parent=1 // pred_check_branch
      %16 = sbr.rel (0) target = $region13
    $region12: #{tpu_custom_call.1} parent=1 // pred_region
      _
    $region13: #{tpu_custom_call.1} parent=1 // pred_fallthru
      _
    // Predicated region
    $region14: #{tpu_custom_call.1} parent=1 // pred_check
      _
    $region15: #{tpu_custom_call.1} parent=1 // pred_check_branch
      %18 = sbr.rel (0) target = $region17
    $region16: #{tpu_custom_call.1} parent=1 // pred_region
      _
    $region17: #{tpu_custom_call.1} parent=1 // pred_fallthru
      _
    // Predicated region
    $region18: #{tpu_custom_call.1} parent=1 // pred_check
      _
    $region19: #{tpu_custom_call.1} parent=1 // pred_check_branch
      %20 = sbr.rel (0) target = $region21
    $region20: #{tpu_custom_call.1} parent=1 // pred_region
      _
    $region21: #{tpu_custom_call.1} parent=1 // pred_fallthru
      _
    %v21 = vld [vmem:[%s0] sm:$0xff]
    %v22 = vld [vmem:[%s0 + $0x8] sm:$0xff]
    %v23 = vld [vmem:[%s0 + $0x10] sm:$0xff]
    %v24 = vld [vmem:[%s0 + $0x18] sm:$0xff]
    %v25 = vld [vmem:[%s0 + $0x20] sm:$0xff]
    %v26 = vld [vmem:[%s0 + $0x28] sm:$0xff]
    %v27 = vld [vmem:[%s0 + $0x30] sm:$0xff]
    %v28 = vld [vmem:[%s0 + $0x38] sm:$0xff]
    %v29 = vld [vmem:[%s0 + $0x40] sm:$0xff]
    %v30 = vld [vmem:[%s0 + $0x48] sm:$0xff]
    %v31 = vld [vmem:[%s0 + $0x50] sm:$0xff]
    %v32 = vld [vmem:[%s0 + $0x58] sm:$0xff]
    %v33 = vld [vmem:[%s0 + $0x60] sm:$0xff]
    %v34 = vld [vmem:[%s0 + $0x68] sm:$0xff]
    %v35 = vld [vmem:[%s0 + $0x70] sm:$0xff]
    %v36 = vld [vmem:[%s0 + $0x78] sm:$0xff]
    %v37 = vld [vmem:[%s0 + $0x80] sm:$0xff]
    %v38 = vld [vmem:[%s0 + $0x88] sm:$0xff]
    %v39 = vld [vmem:[%s0 + $0x90] sm:$0xff]
    %v40 = vld [vmem:[%s0 + $0x98] sm:$0xff]
    %v41 = vld [vmem:[%s0 + $0xa0] sm:$0xff]
    %v42 = vld [vmem:[%s0 + $0xa8] sm:$0xff]
    %v43 = vld [vmem:[%s0 + $0xb0] sm:$0xff]
    %v44 = vld [vmem:[%s0 + $0xb8] sm:$0xff]
    %v45 = vld [vmem:[%s0 + $0xc0] sm:$0xff]
    %v46 = vld [vmem:[%s0 + $0xc8] sm:$0xff]
    %v47 = vld [vmem:[%s0 + $0xd0] sm:$0xff]
    %v48 = vld [vmem:[%s0 + $0xd8] sm:$0xff]
    %v49 = vld [vmem:[%s0 + $0xe0] sm:$0xff]
    %v50 = vld [vmem:[%s0 + $0xe8] sm:$0xff]
    %v51 = vld [vmem:[%s0 + $0xf0] sm:$0xff]
    %v52 = vld [vmem:[%s0 + $0xf8] sm:$0xff]
    %v53 = vld [vmem:[%s1] sm:$0xff]
    %v54 = vld [vmem:[%s1 + $0x8] sm:$0x3]
    %v55 = vld [vmem:[%s2] sm:$0xff]
    %v56 = vld [vmem:[%s2 + $0x8] sm:$0x3]
    %58 = vset.pattern.permute.xlu0 0
    %59 = vperm.xlu0 %58, %v55
    %v60 = vpop.permute.xlu0 %59
    %63 = vset.pattern.permute.xlu0 0
    %64 = vperm.xlu0 %63, %v56
    %v65 = vpop.permute.xlu0 %64
    %vm67 = vcmask 64512
    %v69 = vsel %vm67, %v53, 0
    %v72 = vsel %vm67, %v54, 0
    %74 = vmatpush.msra.mxu0 0.0
    %75 = vmatpush.msra.mxu0 0.0
    %76 = vmatpush.msra.mxu0 0.0
    %77 = vmatpush.msra.mxu0 0.0
    %78 = vmatpush.msra.mxu0 0.0
    %79 = vmatpush.msra.mxu0 0.0
    %80 = vmatpush.msra.mxu0 0.0
    %81 = vmatpush.msra.mxu0 0.0
    %82 = vmatpush.msra.mxu0 0.0
    %83 = vmatpush.msra.mxu0 0.0
    %84 = vmatpush.msra.mxu0 0.0
    %85 = vmatpush.msra.mxu0 0.0
    %86 = vmatpush.msra.mxu0 0.0
    %87 = vmatpush.msra.mxu0 0.0
    %88 = vmatpush.msra.mxu0 0.0
    %89 = vmatpush.msra.mxu0 %v21
    %90 = vmatmul.f32.gmra.mxu0 %v69
    %v91 = vpop.f32.mrf.mxu0
    %v92 = vadd.f32 %v60, %v91
    %93 = vmatmul.f32.gmra.mxu0 %v72
    %v94 = vpop.f32.mrf.mxu0
    %v95 = vadd.f32 %v65, %v94
    %96 = vdwg.mxu0
    %97 = vmatpush.msra.mxu0 0.0
    %98 = vmatpush.msra.mxu0 0.0
    %99 = vmatpush.msra.mxu0 0.0
    %100 = vmatpush.msra.mxu0 0.0
    %101 = vmatpush.msra.mxu0 0.0
    %102 = vmatpush.msra.mxu0 0.0
    %103 = vmatpush.msra.mxu0 0.0
    %104 = vmatpush.msra.mxu0 0.0
    %105 = vmatpush.msra.mxu0 0.0
    %106 = vmatpush.msra.mxu0 0.0
    %107 = vmatpush.msra.mxu0 0.0
    %108 = vmatpush.msra.mxu0 0.0
    %109 = vmatpush.msra.mxu0 0.0
    %110 = vmatpush.msra.mxu0 0.0
    %111 = vmatpush.msra.mxu0 0.0
    %112 = vmatpush.msra.mxu0 %v22
    %113 = vmatmul.f32.gmra.mxu0 %v69
    %v114 = vpop.f32.mrf.mxu0
    %v115 = vadd.f32 %v60, %v114
    %116 = vmatmul.f32.gmra.mxu0 %v72
    %v117 = vpop.f32.mrf.mxu0
    %v118 = vadd.f32 %v65, %v117
    %119 = vdwg.mxu0
    %120 = vmatpush.msra.mxu0 0.0
    %121 = vmatpush.msra.mxu0 0.0
    %122 = vmatpush.msra.mxu0 0.0
    %123 = vmatpush.msra.mxu0 0.0
    %124 = vmatpush.msra.mxu0 0.0
    %125 = vmatpush.msra.mxu0 0.0
    %126 = vmatpush.msra.mxu0 0.0
    %127 = vmatpush.msra.mxu0 0.0
    %128 = vmatpush.msra.mxu0 0.0
    %129 = vmatpush.msra.mxu0 0.0
    %130 = vmatpush.msra.mxu0 0.0
    %131 = vmatpush.msra.mxu0 0.0
    %132 = vmatpush.msra.mxu0 0.0
    %133 = vmatpush.msra.mxu0 0.0
    %134 = vmatpush.msra.mxu0 0.0
    %135 = vmatpush.msra.mxu0 %v23
    %136 = vmatmul.f32.gmra.mxu0 %v69
    %v137 = vpop.f32.mrf.mxu0
    %v138 = vadd.f32 %v60, %v137
    %139 = vmatmul.f32.gmra.mxu0 %v72
    %v140 = vpop.f32.mrf.mxu0
    %v141 = vadd.f32 %v65, %v140
    %142 = vdwg.mxu0
    %143 = vmatpush.msra.mxu0 0.0
    %144 = vmatpush.msra.mxu0 0.0
    %145 = vmatpush.msra.mxu0 0.0
    %146 = vmatpush.msra.mxu0 0.0
    %147 = vmatpush.msra.mxu0 0.0
    %148 = vmatpush.msra.mxu0 0.0
    %149 = vmatpush.msra.mxu0 0.0
    %150 = vmatpush.msra.mxu0 0.0
    %151 = vmatpush.msra.mxu0 0.0
    %152 = vmatpush.msra.mxu0 0.0
    %153 = vmatpush.msra.mxu0 0.0
    %154 = vmatpush.msra.mxu0 0.0
    %155 = vmatpush.msra.mxu0 0.0
    %156 = vmatpush.msra.mxu0 0.0
    %157 = vmatpush.msra.mxu0 0.0
    %158 = vmatpush.msra.mxu0 %v24
    %159 = vmatmul.f32.gmra.mxu0 %v69
    %v160 = vpop.f32.mrf.mxu0
    %v161 = vadd.f32 %v60, %v160
    %162 = vmatmul.f32.gmra.mxu0 %v72
    %v163 = vpop.f32.mrf.mxu0
    %v164 = vadd.f32 %v65, %v163
    %165 = vdwg.mxu0
    %166 = vmatpush.msra.mxu0 0.0
    %167 = vmatpush.msra.mxu0 0.0
    %168 = vmatpush.msra.mxu0 0.0
    %169 = vmatpush.msra.mxu0 0.0
    %170 = vmatpush.msra.mxu0 0.0
    %171 = vmatpush.msra.mxu0 0.0
    %172 = vmatpush.msra.mxu0 0.0
    %173 = vmatpush.msra.mxu0 0.0
    %174 = vmatpush.msra.mxu0 0.0
    %175 = vmatpush.msra.mxu0 0.0
    %176 = vmatpush.msra.mxu0 0.0
    %177 = vmatpush.msra.mxu0 0.0
    %178 = vmatpush.msra.mxu0 0.0
    %179 = vmatpush.msra.mxu0 0.0
    %180 = vmatpush.msra.mxu0 0.0
    %181 = vmatpush.msra.mxu0 %v25
    %182 = vmatmul.f32.gmra.mxu0 %v69
    %v183 = vpop.f32.mrf.mxu0
    %v184 = vadd.f32 %v60, %v183
    %185 = vmatmul.f32.gmra.mxu0 %v72
    %v186 = vpop.f32.mrf.mxu0
    %v187 = vadd.f32 %v65, %v186
    %188 = vdwg.mxu0
    %189 = vmatpush.msra.mxu0 0.0
    %190 = vmatpush.msra.mxu0 0.0
    %191 = vmatpush.msra.mxu0 0.0
    %192 = vmatpush.msra.mxu0 0.0
    %193 = vmatpush.msra.mxu0 0.0
    %194 = vmatpush.msra.mxu0 0.0
    %195 = vmatpush.msra.mxu0 0.0
    %196 = vmatpush.msra.mxu0 0.0
    %197 = vmatpush.msra.mxu0 0.0
    %198 = vmatpush.msra.mxu0 0.0
    %199 = vmatpush.msra.mxu0 0.0
    %200 = vmatpush.msra.mxu0 0.0
    %201 = vmatpush.msra.mxu0 0.0
    %202 = vmatpush.msra.mxu0 0.0
    %203 = vmatpush.msra.mxu0 0.0
    %204 = vmatpush.msra.mxu0 %v26
    %205 = vmatmul.f32.gmra.mxu0 %v69
    %v206 = vpop.f32.mrf.mxu0
    %v207 = vadd.f32 %v60, %v206
    %208 = vmatmul.f32.gmra.mxu0 %v72
    %v209 = vpop.f32.mrf.mxu0
    %v210 = vadd.f32 %v65, %v209
    %211 = vdwg.mxu0
    %212 = vmatpush.msra.mxu0 0.0
    %213 = vmatpush.msra.mxu0 0.0
    %214 = vmatpush.msra.mxu0 0.0
    %215 = vmatpush.msra.mxu0 0.0
    %216 = vmatpush.msra.mxu0 0.0
    %217 = vmatpush.msra.mxu0 0.0
    %218 = vmatpush.msra.mxu0 0.0
    %219 = vmatpush.msra.mxu0 0.0
    %220 = vmatpush.msra.mxu0 0.0
    %221 = vmatpush.msra.mxu0 0.0
    %222 = vmatpush.msra.mxu0 0.0
    %223 = vmatpush.msra.mxu0 0.0
    %224 = vmatpush.msra.mxu0 0.0
    %225 = vmatpush.msra.mxu0 0.0
    %226 = vmatpush.msra.mxu0 0.0
    %227 = vmatpush.msra.mxu0 %v27
    %228 = vmatmul.f32.gmra.mxu0 %v69
    %v229 = vpop.f32.mrf.mxu0
    %v230 = vadd.f32 %v60, %v229
    %231 = vmatmul.f32.gmra.mxu0 %v72
    %v232 = vpop.f32.mrf.mxu0
    %v233 = vadd.f32 %v65, %v232
    %234 = vdwg.mxu0
    %235 = vmatpush.msra.mxu0 0.0
    %236 = vmatpush.msra.mxu0 0.0
    %237 = vmatpush.msra.mxu0 0.0
    %238 = vmatpush.msra.mxu0 0.0
    %239 = vmatpush.msra.mxu0 0.0
    %240 = vmatpush.msra.mxu0 0.0
    %241 = vmatpush.msra.mxu0 0.0
    %242 = vmatpush.msra.mxu0 0.0
    %243 = vmatpush.msra.mxu0 0.0
    %244 = vmatpush.msra.mxu0 0.0
    %245 = vmatpush.msra.mxu0 0.0
    %246 = vmatpush.msra.mxu0 0.0
    %247 = vmatpush.msra.mxu0 0.0
    %248 = vmatpush.msra.mxu0 0.0
    %249 = vmatpush.msra.mxu0 0.0
    %250 = vmatpush.msra.mxu0 %v28
    %251 = vmatmul.f32.gmra.mxu0 %v69
    %v252 = vpop.f32.mrf.mxu0
    %v253 = vadd.f32 %v60, %v252
    %254 = vmatmul.f32.gmra.mxu0 %v72
    %v255 = vpop.f32.mrf.mxu0
    %v256 = vadd.f32 %v65, %v255
    %257 = vdwg.mxu0
    %258 = vmatpush.msra.mxu0 0.0
    %259 = vmatpush.msra.mxu0 0.0
    %260 = vmatpush.msra.mxu0 0.0
    %261 = vmatpush.msra.mxu0 0.0
    %262 = vmatpush.msra.mxu0 0.0
    %263 = vmatpush.msra.mxu0 0.0
    %264 = vmatpush.msra.mxu0 0.0
    %265 = vmatpush.msra.mxu0 0.0
    %266 = vmatpush.msra.mxu0 0.0
    %267 = vmatpush.msra.mxu0 0.0
    %268 = vmatpush.msra.mxu0 0.0
    %269 = vmatpush.msra.mxu0 0.0
    %270 = vmatpush.msra.mxu0 0.0
    %271 = vmatpush.msra.mxu0 0.0
    %272 = vmatpush.msra.mxu0 0.0
    %273 = vmatpush.msra.mxu0 %v29
    %274 = vmatmul.f32.gmra.mxu0 %v69
    %v275 = vpop.f32.mrf.mxu0
    %v276 = vadd.f32 %v60, %v275
    %277 = vmatmul.f32.gmra.mxu0 %v72
    %v278 = vpop.f32.mrf.mxu0
    %v279 = vadd.f32 %v65, %v278
    %280 = vdwg.mxu0
    %281 = vmatpush.msra.mxu0 0.0
    %282 = vmatpush.msra.mxu0 0.0
    %283 = vmatpush.msra.mxu0 0.0
    %284 = vmatpush.msra.mxu0 0.0
    %285 = vmatpush.msra.mxu0 0.0
    %286 = vmatpush.msra.mxu0 0.0
    %287 = vmatpush.msra.mxu0 0.0
    %288 = vmatpush.msra.mxu0 0.0
    %289 = vmatpush.msra.mxu0 0.0
    %290 = vmatpush.msra.mxu0 0.0
    %291 = vmatpush.msra.mxu0 0.0
    %292 = vmatpush.msra.mxu0 0.0
    %293 = vmatpush.msra.mxu0 0.0
    %294 = vmatpush.msra.mxu0 0.0
    %295 = vmatpush.msra.mxu0 0.0
    %296 = vmatpush.msra.mxu0 %v30
    %297 = vmatmul.f32.gmra.mxu0 %v69
    %v298 = vpop.f32.mrf.mxu0
    %v299 = vadd.f32 %v60, %v298
    %300 = vmatmul.f32.gmra.mxu0 %v72
    %v301 = vpop.f32.mrf.mxu0
    %v302 = vadd.f32 %v65, %v301
    %303 = vdwg.mxu0
    %304 = vmatpush.msra.mxu0 0.0
    %305 = vmatpush.msra.mxu0 0.0
    %306 = vmatpush.msra.mxu0 0.0
    %307 = vmatpush.msra.mxu0 0.0
    %308 = vmatpush.msra.mxu0 0.0
    %309 = vmatpush.msra.mxu0 0.0
    %310 = vmatpush.msra.mxu0 0.0
    %311 = vmatpush.msra.mxu0 0.0
    %312 = vmatpush.msra.mxu0 0.0
    %313 = vmatpush.msra.mxu0 0.0
    %314 = vmatpush.msra.mxu0 0.0
    %315 = vmatpush.msra.mxu0 0.0
    %316 = vmatpush.msra.mxu0 0.0
    %317 = vmatpush.msra.mxu0 0.0
    %318 = vmatpush.msra.mxu0 0.0
    %319 = vmatpush.msra.mxu0 %v31
    %320 = vmatmul.f32.gmra.mxu0 %v69
    %v321 = vpop.f32.mrf.mxu0
    %v322 = vadd.f32 %v60, %v321
    %323 = vmatmul.f32.gmra.mxu0 %v72
    %v324 = vpop.f32.mrf.mxu0
    %v325 = vadd.f32 %v65, %v324
    %326 = vdwg.mxu0
    %327 = vmatpush.msra.mxu0 0.0
    %328 = vmatpush.msra.mxu0 0.0
    %329 = vmatpush.msra.mxu0 0.0
    %330 = vmatpush.msra.mxu0 0.0
    %331 = vmatpush.msra.mxu0 0.0
    %332 = vmatpush.msra.mxu0 0.0
    %333 = vmatpush.msra.mxu0 0.0
    %334 = vmatpush.msra.mxu0 0.0
    %335 = vmatpush.msra.mxu0 0.0
    %336 = vmatpush.msra.mxu0 0.0
    %337 = vmatpush.msra.mxu0 0.0
    %338 = vmatpush.msra.mxu0 0.0
    %339 = vmatpush.msra.mxu0 0.0
    %340 = vmatpush.msra.mxu0 0.0
    %341 = vmatpush.msra.mxu0 0.0
    %342 = vmatpush.msra.mxu0 %v32
    %343 = vmatmul.f32.gmra.mxu0 %v69
    %v344 = vpop.f32.mrf.mxu0
    %v345 = vadd.f32 %v60, %v344
    %346 = vmatmul.f32.gmra.mxu0 %v72
    %v347 = vpop.f32.mrf.mxu0
    %v348 = vadd.f32 %v65, %v347
    %349 = vdwg.mxu0
    %350 = vmatpush.msra.mxu0 0.0
    %351 = vmatpush.msra.mxu0 0.0
    %352 = vmatpush.msra.mxu0 0.0
    %353 = vmatpush.msra.mxu0 0.0
    %354 = vmatpush.msra.mxu0 0.0
    %355 = vmatpush.msra.mxu0 0.0
    %356 = vmatpush.msra.mxu0 0.0
    %357 = vmatpush.msra.mxu0 0.0
    %358 = vmatpush.msra.mxu0 0.0
    %359 = vmatpush.msra.mxu0 0.0
    %360 = vmatpush.msra.mxu0 0.0
    %361 = vmatpush.msra.mxu0 0.0
    %362 = vmatpush.msra.mxu0 0.0
    %363 = vmatpush.msra.mxu0 0.0
    %364 = vmatpush.msra.mxu0 0.0
    %365 = vmatpush.msra.mxu0 %v33
    %366 = vmatmul.f32.gmra.mxu0 %v69
    %v367 = vpop.f32.mrf.mxu0
    %v368 = vadd.f32 %v60, %v367
    %369 = vmatmul.f32.gmra.mxu0 %v72
    %v370 = vpop.f32.mrf.mxu0
    %v371 = vadd.f32 %v65, %v370
    %372 = vdwg.mxu0
    %373 = vmatpush.msra.mxu0 0.0
    %374 = vmatpush.msra.mxu0 0.0
    %375 = vmatpush.msra.mxu0 0.0
    %376 = vmatpush.msra.mxu0 0.0
    %377 = vmatpush.msra.mxu0 0.0
    %378 = vmatpush.msra.mxu0 0.0
    %379 = vmatpush.msra.mxu0 0.0
    %380 = vmatpush.msra.mxu0 0.0
    %381 = vmatpush.msra.mxu0 0.0
    %382 = vmatpush.msra.mxu0 0.0
    %383 = vmatpush.msra.mxu0 0.0
    %384 = vmatpush.msra.mxu0 0.0
    %385 = vmatpush.msra.mxu0 0.0
    %386 = vmatpush.msra.mxu0 0.0
    %387 = vmatpush.msra.mxu0 0.0
    %388 = vmatpush.msra.mxu0 %v34
    %389 = vmatmul.f32.gmra.mxu0 %v69
    %v390 = vpop.f32.mrf.mxu0
    %v391 = vadd.f32 %v60, %v390
    %392 = vmatmul.f32.gmra.mxu0 %v72
    %v393 = vpop.f32.mrf.mxu0
    %v394 = vadd.f32 %v65, %v393
    %395 = vdwg.mxu0
    %396 = vmatpush.msra.mxu0 0.0
    %397 = vmatpush.msra.mxu0 0.0
    %398 = vmatpush.msra.mxu0 0.0
    %399 = vmatpush.msra.mxu0 0.0
    %400 = vmatpush.msra.mxu0 0.0
    %401 = vmatpush.msra.mxu0 0.0
    %402 = vmatpush.msra.mxu0 0.0
    %403 = vmatpush.msra.mxu0 0.0
    %404 = vmatpush.msra.mxu0 0.0
    %405 = vmatpush.msra.mxu0 0.0
    %406 = vmatpush.msra.mxu0 0.0
    %407 = vmatpush.msra.mxu0 0.0
    %408 = vmatpush.msra.mxu0 0.0
    %409 = vmatpush.msra.mxu0 0.0
    %410 = vmatpush.msra.mxu0 0.0
    %411 = vmatpush.msra.mxu0 %v35
    %412 = vmatmul.f32.gmra.mxu0 %v69
    %v413 = vpop.f32.mrf.mxu0
    %v414 = vadd.f32 %v60, %v413
    %415 = vmatmul.f32.gmra.mxu0 %v72
    %v416 = vpop.f32.mrf.mxu0
    %v417 = vadd.f32 %v65, %v416
    %418 = vdwg.mxu0
    %419 = vmatpush.msra.mxu0 0.0
    %420 = vmatpush.msra.mxu0 0.0
    %421 = vmatpush.msra.mxu0 0.0
    %422 = vmatpush.msra.mxu0 0.0
    %423 = vmatpush.msra.mxu0 0.0
    %424 = vmatpush.msra.mxu0 0.0
    %425 = vmatpush.msra.mxu0 0.0
    %426 = vmatpush.msra.mxu0 0.0
    %427 = vmatpush.msra.mxu0 0.0
    %428 = vmatpush.msra.mxu0 0.0
    %429 = vmatpush.msra.mxu0 0.0
    %430 = vmatpush.msra.mxu0 0.0
    %431 = vmatpush.msra.mxu0 0.0
    %432 = vmatpush.msra.mxu0 0.0
    %433 = vmatpush.msra.mxu0 0.0
    %434 = vmatpush.msra.mxu0 %v36
    %435 = vmatmul.f32.gmra.mxu0 %v69
    %v436 = vpop.f32.mrf.mxu0
    %v437 = vadd.f32 %v60, %v436
    %438 = vmatmul.f32.gmra.mxu0 %v72
    %v439 = vpop.f32.mrf.mxu0
    %v440 = vadd.f32 %v65, %v439
    %441 = vdwg.mxu0
    %442 = vmatpush.msra.mxu0 0.0
    %443 = vmatpush.msra.mxu0 0.0
    %444 = vmatpush.msra.mxu0 0.0
    %445 = vmatpush.msra.mxu0 0.0
    %446 = vmatpush.msra.mxu0 0.0
    %447 = vmatpush.msra.mxu0 0.0
    %448 = vmatpush.msra.mxu0 0.0
    %449 = vmatpush.msra.mxu0 0.0
    %450 = vmatpush.msra.mxu0 0.0
    %451 = vmatpush.msra.mxu0 0.0
    %452 = vmatpush.msra.mxu0 0.0
    %453 = vmatpush.msra.mxu0 0.0
    %454 = vmatpush.msra.mxu0 0.0
    %455 = vmatpush.msra.mxu0 0.0
    %456 = vmatpush.msra.mxu0 0.0
    %457 = vmatpush.msra.mxu0 %v37
    %458 = vmatmul.f32.gmra.mxu0 %v69
    %v459 = vpop.f32.mrf.mxu0
    %v460 = vadd.f32 %v60, %v459
    %461 = vmatmul.f32.gmra.mxu0 %v72
    %v462 = vpop.f32.mrf.mxu0
    %v463 = vadd.f32 %v65, %v462
    %464 = vdwg.mxu0
    %465 = vmatpush.msra.mxu0 0.0
    %466 = vmatpush.msra.mxu0 0.0
    %467 = vmatpush.msra.mxu0 0.0
    %468 = vmatpush.msra.mxu0 0.0
    %469 = vmatpush.msra.mxu0 0.0
    %470 = vmatpush.msra.mxu0 0.0
    %471 = vmatpush.msra.mxu0 0.0
    %472 = vmatpush.msra.mxu0 0.0
    %473 = vmatpush.msra.mxu0 0.0
    %474 = vmatpush.msra.mxu0 0.0
    %475 = vmatpush.msra.mxu0 0.0
    %476 = vmatpush.msra.mxu0 0.0
    %477 = vmatpush.msra.mxu0 0.0
    %478 = vmatpush.msra.mxu0 0.0
    %479 = vmatpush.msra.mxu0 0.0
    %480 = vmatpush.msra.mxu0 %v38
    %481 = vmatmul.f32.gmra.mxu0 %v69
    %v482 = vpop.f32.mrf.mxu0
    %v483 = vadd.f32 %v60, %v482
    %484 = vmatmul.f32.gmra.mxu0 %v72
    %v485 = vpop.f32.mrf.mxu0
    %v486 = vadd.f32 %v65, %v485
    %487 = vdwg.mxu0
    %488 = vmatpush.msra.mxu0 0.0
    %489 = vmatpush.msra.mxu0 0.0
    %490 = vmatpush.msra.mxu0 0.0
    %491 = vmatpush.msra.mxu0 0.0
    %492 = vmatpush.msra.mxu0 0.0
    %493 = vmatpush.msra.mxu0 0.0
    %494 = vmatpush.msra.mxu0 0.0
    %495 = vmatpush.msra.mxu0 0.0
    %496 = vmatpush.msra.mxu0 0.0
    %497 = vmatpush.msra.mxu0 0.0
    %498 = vmatpush.msra.mxu0 0.0
    %499 = vmatpush.msra.mxu0 0.0
    %500 = vmatpush.msra.mxu0 0.0
    %501 = vmatpush.msra.mxu0 0.0
    %502 = vmatpush.msra.mxu0 0.0
    %503 = vmatpush.msra.mxu0 %v39
    %504 = vmatmul.f32.gmra.mxu0 %v69
    %v505 = vpop.f32.mrf.mxu0
    %v506 = vadd.f32 %v60, %v505
    %507 = vmatmul.f32.gmra.mxu0 %v72
    %v508 = vpop.f32.mrf.mxu0
    %v509 = vadd.f32 %v65, %v508
    %510 = vdwg.mxu0
    %511 = vmatpush.msra.mxu0 0.0
    %512 = vmatpush.msra.mxu0 0.0
    %513 = vmatpush.msra.mxu0 0.0
    %514 = vmatpush.msra.mxu0 0.0
    %515 = vmatpush.msra.mxu0 0.0
    %516 = vmatpush.msra.mxu0 0.0
    %517 = vmatpush.msra.mxu0 0.0
    %518 = vmatpush.msra.mxu0 0.0
    %519 = vmatpush.msra.mxu0 0.0
    %520 = vmatpush.msra.mxu0 0.0
    %521 = vmatpush.msra.mxu0 0.0
    %522 = vmatpush.msra.mxu0 0.0
    %523 = vmatpush.msra.mxu0 0.0
    %524 = vmatpush.msra.mxu0 0.0
    %525 = vmatpush.msra.mxu0 0.0
    %526 = vmatpush.msra.mxu0 %v40
    %527 = vmatmul.f32.gmra.mxu0 %v69
    %v528 = vpop.f32.mrf.mxu0
    %v529 = vadd.f32 %v60, %v528
    %530 = vmatmul.f32.gmra.mxu0 %v72
    %v531 = vpop.f32.mrf.mxu0
    %v532 = vadd.f32 %v65, %v531
    %533 = vdwg.mxu0
    %534 = vmatpush.msra.mxu0 0.0
    %535 = vmatpush.msra.mxu0 0.0
    %536 = vmatpush.msra.mxu0 0.0
    %537 = vmatpush.msra.mxu0 0.0
    %538 = vmatpush.msra.mxu0 0.0
    %539 = vmatpush.msra.mxu0 0.0
    %540 = vmatpush.msra.mxu0 0.0
    %541 = vmatpush.msra.mxu0 0.0
    %542 = vmatpush.msra.mxu0 0.0
    %543 = vmatpush.msra.mxu0 0.0
    %544 = vmatpush.msra.mxu0 0.0
    %545 = vmatpush.msra.mxu0 0.0
    %546 = vmatpush.msra.mxu0 0.0
    %547 = vmatpush.msra.mxu0 0.0
    %548 = vmatpush.msra.mxu0 0.0
    %549 = vmatpush.msra.mxu0 %v41
    %550 = vmatmul.f32.gmra.mxu0 %v69
    %v551 = vpop.f32.mrf.mxu0
    %v552 = vadd.f32 %v60, %v551
    %553 = vmatmul.f32.gmra.mxu0 %v72
    %v554 = vpop.f32.mrf.mxu0
    %v555 = vadd.f32 %v65, %v554
    %556 = vdwg.mxu0
    %557 = vmatpush.msra.mxu0 0.0
    %558 = vmatpush.msra.mxu0 0.0
    %559 = vmatpush.msra.mxu0 0.0
    %560 = vmatpush.msra.mxu0 0.0
    %561 = vmatpush.msra.mxu0 0.0
    %562 = vmatpush.msra.mxu0 0.0
    %563 = vmatpush.msra.mxu0 0.0
    %564 = vmatpush.msra.mxu0 0.0
    %565 = vmatpush.msra.mxu0 0.0
    %566 = vmatpush.msra.mxu0 0.0
    %567 = vmatpush.msra.mxu0 0.0
    %568 = vmatpush.msra.mxu0 0.0
    %569 = vmatpush.msra.mxu0 0.0
    %570 = vmatpush.msra.mxu0 0.0
    %571 = vmatpush.msra.mxu0 0.0
    %572 = vmatpush.msra.mxu0 %v42
    %573 = vmatmul.f32.gmra.mxu0 %v69
    %v574 = vpop.f32.mrf.mxu0
    %v575 = vadd.f32 %v60, %v574
    %576 = vmatmul.f32.gmra.mxu0 %v72
    %v577 = vpop.f32.mrf.mxu0
    %v578 = vadd.f32 %v65, %v577
    %579 = vdwg.mxu0
    %580 = vmatpush.msra.mxu0 0.0
    %581 = vmatpush.msra.mxu0 0.0
    %582 = vmatpush.msra.mxu0 0.0
    %583 = vmatpush.msra.mxu0 0.0
    %584 = vmatpush.msra.mxu0 0.0
    %585 = vmatpush.msra.mxu0 0.0
    %586 = vmatpush.msra.mxu0 0.0
    %587 = vmatpush.msra.mxu0 0.0
    %588 = vmatpush.msra.mxu0 0.0
    %589 = vmatpush.msra.mxu0 0.0
    %590 = vmatpush.msra.mxu0 0.0
    %591 = vmatpush.msra.mxu0 0.0
    %592 = vmatpush.msra.mxu0 0.0
    %593 = vmatpush.msra.mxu0 0.0
    %594 = vmatpush.msra.mxu0 0.0
    %595 = vmatpush.msra.mxu0 %v43
    %596 = vmatmul.f32.gmra.mxu0 %v69
    %v597 = vpop.f32.mrf.mxu0
    %v598 = vadd.f32 %v60, %v597
    %599 = vmatmul.f32.gmra.mxu0 %v72
    %v600 = vpop.f32.mrf.mxu0
    %v601 = vadd.f32 %v65, %v600
    %602 = vdwg.mxu0
    %603 = vmatpush.msra.mxu0 0.0
    %604 = vmatpush.msra.mxu0 0.0
    %605 = vmatpush.msra.mxu0 0.0
    %606 = vmatpush.msra.mxu0 0.0
    %607 = vmatpush.msra.mxu0 0.0
    %608 = vmatpush.msra.mxu0 0.0
    %609 = vmatpush.msra.mxu0 0.0
    %610 = vmatpush.msra.mxu0 0.0
    %611 = vmatpush.msra.mxu0 0.0
    %612 = vmatpush.msra.mxu0 0.0
    %613 = vmatpush.msra.mxu0 0.0
    %614 = vmatpush.msra.mxu0 0.0
    %615 = vmatpush.msra.mxu0 0.0
    %616 = vmatpush.msra.mxu0 0.0
    %617 = vmatpush.msra.mxu0 0.0
    %618 = vmatpush.msra.mxu0 %v44
    %619 = vmatmul.f32.gmra.mxu0 %v69
    %v620 = vpop.f32.mrf.mxu0
    %v621 = vadd.f32 %v60, %v620
    %622 = vmatmul.f32.gmra.mxu0 %v72
    %v623 = vpop.f32.mrf.mxu0
    %v624 = vadd.f32 %v65, %v623
    %625 = vdwg.mxu0
    %626 = vmatpush.msra.mxu0 0.0
    %627 = vmatpush.msra.mxu0 0.0
    %628 = vmatpush.msra.mxu0 0.0
    %629 = vmatpush.msra.mxu0 0.0
    %630 = vmatpush.msra.mxu0 0.0
    %631 = vmatpush.msra.mxu0 0.0
    %632 = vmatpush.msra.mxu0 0.0
    %633 = vmatpush.msra.mxu0 0.0
    %634 = vmatpush.msra.mxu0 0.0
    %635 = vmatpush.msra.mxu0 0.0
    %636 = vmatpush.msra.mxu0 0.0
    %637 = vmatpush.msra.mxu0 0.0
    %638 = vmatpush.msra.mxu0 0.0
    %639 = vmatpush.msra.mxu0 0.0
    %640 = vmatpush.msra.mxu0 0.0
    %641 = vmatpush.msra.mxu0 %v45
    %642 = vmatmul.f32.gmra.mxu0 %v69
    %v643 = vpop.f32.mrf.mxu0
    %v644 = vadd.f32 %v60, %v643
    %645 = vmatmul.f32.gmra.mxu0 %v72
    %v646 = vpop.f32.mrf.mxu0
    %v647 = vadd.f32 %v65, %v646
    %648 = vdwg.mxu0
    %649 = vmatpush.msra.mxu0 0.0
    %650 = vmatpush.msra.mxu0 0.0
    %651 = vmatpush.msra.mxu0 0.0
    %652 = vmatpush.msra.mxu0 0.0
    %653 = vmatpush.msra.mxu0 0.0
    %654 = vmatpush.msra.mxu0 0.0
    %655 = vmatpush.msra.mxu0 0.0
    %656 = vmatpush.msra.mxu0 0.0
    %657 = vmatpush.msra.mxu0 0.0
    %658 = vmatpush.msra.mxu0 0.0
    %659 = vmatpush.msra.mxu0 0.0
    %660 = vmatpush.msra.mxu0 0.0
    %661 = vmatpush.msra.mxu0 0.0
    %662 = vmatpush.msra.mxu0 0.0
    %663 = vmatpush.msra.mxu0 0.0
    %664 = vmatpush.msra.mxu0 %v46
    %665 = vmatmul.f32.gmra.mxu0 %v69
    %v666 = vpop.f32.mrf.mxu0
    %v667 = vadd.f32 %v60, %v666
    %668 = vmatmul.f32.gmra.mxu0 %v72
    %v669 = vpop.f32.mrf.mxu0
    %v670 = vadd.f32 %v65, %v669
    %671 = vdwg.mxu0
    %672 = vmatpush.msra.mxu0 0.0
    %673 = vmatpush.msra.mxu0 0.0
    %674 = vmatpush.msra.mxu0 0.0
    %675 = vmatpush.msra.mxu0 0.0
    %676 = vmatpush.msra.mxu0 0.0
    %677 = vmatpush.msra.mxu0 0.0
    %678 = vmatpush.msra.mxu0 0.0
    %679 = vmatpush.msra.mxu0 0.0
    %680 = vmatpush.msra.mxu0 0.0
    %681 = vmatpush.msra.mxu0 0.0
    %682 = vmatpush.msra.mxu0 0.0
    %683 = vmatpush.msra.mxu0 0.0
    %684 = vmatpush.msra.mxu0 0.0
    %685 = vmatpush.msra.mxu0 0.0
    %686 = vmatpush.msra.mxu0 0.0
    %687 = vmatpush.msra.mxu0 %v47
    %688 = vmatmul.f32.gmra.mxu0 %v69
    %v689 = vpop.f32.mrf.mxu0
    %v690 = vadd.f32 %v60, %v689
    %691 = vmatmul.f32.gmra.mxu0 %v72
    %v692 = vpop.f32.mrf.mxu0
    %v693 = vadd.f32 %v65, %v692
    %694 = vdwg.mxu0
    %695 = vmatpush.msra.mxu0 0.0
    %696 = vmatpush.msra.mxu0 0.0
    %697 = vmatpush.msra.mxu0 0.0
    %698 = vmatpush.msra.mxu0 0.0
    %699 = vmatpush.msra.mxu0 0.0
    %700 = vmatpush.msra.mxu0 0.0
    %701 = vmatpush.msra.mxu0 0.0
    %702 = vmatpush.msra.mxu0 0.0
    %703 = vmatpush.msra.mxu0 0.0
    %704 = vmatpush.msra.mxu0 0.0
    %705 = vmatpush.msra.mxu0 0.0
    %706 = vmatpush.msra.mxu0 0.0
    %707 = vmatpush.msra.mxu0 0.0
    %708 = vmatpush.msra.mxu0 0.0
    %709 = vmatpush.msra.mxu0 0.0
    %710 = vmatpush.msra.mxu0 %v48
    %711 = vmatmul.f32.gmra.mxu0 %v69
    %v712 = vpop.f32.mrf.mxu0
    %v713 = vadd.f32 %v60, %v712
    %714 = vmatmul.f32.gmra.mxu0 %v72
    %v715 = vpop.f32.mrf.mxu0
    %v716 = vadd.f32 %v65, %v715
    %717 = vdwg.mxu0
    %718 = vmatpush.msra.mxu0 0.0
    %719 = vmatpush.msra.mxu0 0.0
    %720 = vmatpush.msra.mxu0 0.0
    %721 = vmatpush.msra.mxu0 0.0
    %722 = vmatpush.msra.mxu0 0.0
    %723 = vmatpush.msra.mxu0 0.0
    %724 = vmatpush.msra.mxu0 0.0
    %725 = vmatpush.msra.mxu0 0.0
    %726 = vmatpush.msra.mxu0 0.0
    %727 = vmatpush.msra.mxu0 0.0
    %728 = vmatpush.msra.mxu0 0.0
    %729 = vmatpush.msra.mxu0 0.0
    %730 = vmatpush.msra.mxu0 0.0
    %731 = vmatpush.msra.mxu0 0.0
    %732 = vmatpush.msra.mxu0 0.0
    %733 = vmatpush.msra.mxu0 %v49
    %734 = vmatmul.f32.gmra.mxu0 %v69
    %v735 = vpop.f32.mrf.mxu0
    %v736 = vadd.f32 %v60, %v735
    %737 = vmatmul.f32.gmra.mxu0 %v72
    %v738 = vpop.f32.mrf.mxu0
    %v739 = vadd.f32 %v65, %v738
    %740 = vdwg.mxu0
    %741 = vmatpush.msra.mxu0 0.0
    %742 = vmatpush.msra.mxu0 0.0
    %743 = vmatpush.msra.mxu0 0.0
    %744 = vmatpush.msra.mxu0 0.0
    %745 = vmatpush.msra.mxu0 0.0
    %746 = vmatpush.msra.mxu0 0.0
    %747 = vmatpush.msra.mxu0 0.0
    %748 = vmatpush.msra.mxu0 0.0
    %749 = vmatpush.msra.mxu0 0.0
    %750 = vmatpush.msra.mxu0 0.0
    %751 = vmatpush.msra.mxu0 0.0
    %752 = vmatpush.msra.mxu0 0.0
    %753 = vmatpush.msra.mxu0 0.0
    %754 = vmatpush.msra.mxu0 0.0
    %755 = vmatpush.msra.mxu0 0.0
    %756 = vmatpush.msra.mxu0 %v50
    %757 = vmatmul.f32.gmra.mxu0 %v69
    %v758 = vpop.f32.mrf.mxu0
    %v759 = vadd.f32 %v60, %v758
    %760 = vmatmul.f32.gmra.mxu0 %v72
    %v761 = vpop.f32.mrf.mxu0
    %v762 = vadd.f32 %v65, %v761
    %763 = vdwg.mxu0
    %764 = vmatpush.msra.mxu0 0.0
    %765 = vmatpush.msra.mxu0 0.0
    %766 = vmatpush.msra.mxu0 0.0
    %767 = vmatpush.msra.mxu0 0.0
    %768 = vmatpush.msra.mxu0 0.0
    %769 = vmatpush.msra.mxu0 0.0
    %770 = vmatpush.msra.mxu0 0.0
    %771 = vmatpush.msra.mxu0 0.0
    %772 = vmatpush.msra.mxu0 0.0
    %773 = vmatpush.msra.mxu0 0.0
    %774 = vmatpush.msra.mxu0 0.0
    %775 = vmatpush.msra.mxu0 0.0
    %776 = vmatpush.msra.mxu0 0.0
    %777 = vmatpush.msra.mxu0 0.0
    %778 = vmatpush.msra.mxu0 0.0
    %779 = vmatpush.msra.mxu0 %v51
    %780 = vmatmul.f32.gmra.mxu0 %v69
    %v781 = vpop.f32.mrf.mxu0
    %v782 = vadd.f32 %v60, %v781
    %783 = vmatmul.f32.gmra.mxu0 %v72
    %v784 = vpop.f32.mrf.mxu0
    %v785 = vadd.f32 %v65, %v784
    %786 = vdwg.mxu0
    %787 = vmatpush.msra.mxu0 0.0
    %788 = vmatpush.msra.mxu0 0.0
    %789 = vmatpush.msra.mxu0 0.0
    %790 = vmatpush.msra.mxu0 0.0
    %791 = vmatpush.msra.mxu0 0.0
    %792 = vmatpush.msra.mxu0 0.0
    %793 = vmatpush.msra.mxu0 0.0
    %794 = vmatpush.msra.mxu0 0.0
    %795 = vmatpush.msra.mxu0 0.0
    %796 = vmatpush.msra.mxu0 0.0
    %797 = vmatpush.msra.mxu0 0.0
    %798 = vmatpush.msra.mxu0 0.0
    %799 = vmatpush.msra.mxu0 0.0
    %800 = vmatpush.msra.mxu0 0.0
    %801 = vmatpush.msra.mxu0 0.0
    %802 = vmatpush.msra.mxu0 %v52
    %803 = vmatmul.f32.gmra.mxu0 %v69
    %v804 = vpop.f32.mrf.mxu0
    %v805 = vadd.f32 %v60, %v804
    %806 = vmatmul.f32.gmra.mxu0 %v72
    %v807 = vpop.f32.mrf.mxu0
    %v808 = vadd.f32 %v65, %v807
    %809 = vdwg.mxu0
    %v810 = vmax.f32 %v92, 0.0
    %v811 = vmax.f32 %v115, 0.0
    %v812 = vmax.f32 %v138, 0.0
    %v813 = vmax.f32 %v161, 0.0
    %v814 = vmax.f32 %v184, 0.0
    %v815 = vmax.f32 %v207, 0.0
    %v816 = vmax.f32 %v230, 0.0
    %v817 = vmax.f32 %v253, 0.0
    %v818 = vmax.f32 %v276, 0.0
    %v819 = vmax.f32 %v299, 0.0
    %v820 = vmax.f32 %v322, 0.0
    %v821 = vmax.f32 %v345, 0.0
    %v822 = vmax.f32 %v368, 0.0
    %v823 = vmax.f32 %v391, 0.0
    %v824 = vmax.f32 %v414, 0.0
    %v825 = vmax.f32 %v437, 0.0
    %v826 = vmax.f32 %v460, 0.0
    %v827 = vmax.f32 %v483, 0.0
    %v828 = vmax.f32 %v506, 0.0
    %v829 = vmax.f32 %v529, 0.0
    %v830 = vmax.f32 %v552, 0.0
    %v831 = vmax.f32 %v575, 0.0
    %v832 = vmax.f32 %v598, 0.0
    %v833 = vmax.f32 %v621, 0.0
    %v834 = vmax.f32 %v644, 0.0
    %v835 = vmax.f32 %v667, 0.0
    %v836 = vmax.f32 %v690, 0.0
    %v837 = vmax.f32 %v713, 0.0
    %v838 = vmax.f32 %v736, 0.0
    %v839 = vmax.f32 %v759, 0.0
    %v840 = vmax.f32 %v782, 0.0
    %v841 = vmax.f32 %v805, 0.0
    %v842 = vmax.f32 %v95, 0.0
    %v843 = vmax.f32 %v118, 0.0
    %v844 = vmax.f32 %v141, 0.0
    %v845 = vmax.f32 %v164, 0.0
    %v846 = vmax.f32 %v187, 0.0
    %v847 = vmax.f32 %v210, 0.0
    %v848 = vmax.f32 %v233, 0.0
    %v849 = vmax.f32 %v256, 0.0
    %v850 = vmax.f32 %v279, 0.0
    %v851 = vmax.f32 %v302, 0.0
    %v852 = vmax.f32 %v325, 0.0
    %v853 = vmax.f32 %v348, 0.0
    %v854 = vmax.f32 %v371, 0.0
    %v855 = vmax.f32 %v394, 0.0
    %v856 = vmax.f32 %v417, 0.0
    %v857 = vmax.f32 %v440, 0.0
    %v858 = vmax.f32 %v463, 0.0
    %v859 = vmax.f32 %v486, 0.0
    %v860 = vmax.f32 %v509, 0.0
    %v861 = vmax.f32 %v532, 0.0
    %v862 = vmax.f32 %v555, 0.0
    %v863 = vmax.f32 %v578, 0.0
    %v864 = vmax.f32 %v601, 0.0
    %v865 = vmax.f32 %v624, 0.0
    %v866 = vmax.f32 %v647, 0.0
    %v867 = vmax.f32 %v670, 0.0
    %v868 = vmax.f32 %v693, 0.0
    %v869 = vmax.f32 %v716, 0.0
    %v870 = vmax.f32 %v739, 0.0
    %v871 = vmax.f32 %v762, 0.0
    %v872 = vmax.f32 %v785, 0.0
    %v873 = vmax.f32 %v808, 0.0
    %v874 = vld [vmem:[%s3] sm:$0xff]
    %s875 = scalar_lea.vmem %s3, 8
    %v876 = vld [vmem:[%s875] sm:$0xff]
    %vm877 = vcmask 80896
    %v879 = vsel %vm877, %v876, 0
    %vm881 = vcmask 1041408
    %v883 = vsel %vm881, %v843, 0
    %885 = vmatpush.msra.mxu0 0.0
    %886 = vmatpush.msra.mxu0 0.0
    %887 = vmatpush.msra.mxu0 0.0
    %888 = vmatpush.msra.mxu0 0.0
    %889 = vmatpush.msra.mxu0 0.0
    %890 = vmatpush.msra.mxu0 0.0
    %891 = vmatpush.msra.mxu0 0.0
    %892 = vmatpush.msra.mxu0 0.0
    %893 = vmatpush.msra.mxu0 0.0
    %894 = vmatpush.msra.mxu0 0.0
    %895 = vmatpush.msra.mxu0 0.0
    %896 = vmatpush.msra.mxu0 0.0
    %897 = vmatpush.msra.mxu0 0.0
    %898 = vmatpush.msra.mxu0 0.0
    %899 = vmatpush.msra.mxu0 %v883
    %900 = vmatpush.msra.mxu0 %v811
    %901 = vmatmul.f32.gmra.mxu0 %v879
    %v902 = vpop.f32.mrf.mxu0
    %v903 = vadd.f32 0.0, %v902
    %904 = vdwg.mxu0
    %v906 = vsel %vm877, %v874, 0
    %v909 = vsel %vm881, %v842, 0
    %911 = vmatpush.msra.mxu0 0.0
    %912 = vmatpush.msra.mxu0 0.0
    %913 = vmatpush.msra.mxu0 0.0
    %914 = vmatpush.msra.mxu0 0.0
    %915 = vmatpush.msra.mxu0 0.0
    %916 = vmatpush.msra.mxu0 0.0
    %917 = vmatpush.msra.mxu0 0.0
    %918 = vmatpush.msra.mxu0 0.0
    %919 = vmatpush.msra.mxu0 0.0
    %920 = vmatpush.msra.mxu0 0.0
    %921 = vmatpush.msra.mxu0 0.0
    %922 = vmatpush.msra.mxu0 0.0
    %923 = vmatpush.msra.mxu0 0.0
    %924 = vmatpush.msra.mxu0 0.0
    %925 = vmatpush.msra.mxu0 %v909
    %926 = vmatpush.msra.mxu0 %v810
    %927 = vmatmul.f32.gmra.mxu0 %v906
    %v928 = vpop.f32.mrf.mxu0
    %v929 = vadd.f32 %v903, %v928
    %930 = vdwg.mxu0
    %s931 = scalar_lea.vmem %s3, 16
    %v932 = vld [vmem:[%s931] sm:$0xff]
    %v934 = vsel %vm877, %v932, 0
    %v937 = vsel %vm881, %v844, 0
    %939 = vmatpush.msra.mxu0 0.0
    %940 = vmatpush.msra.mxu0 0.0
    %941 = vmatpush.msra.mxu0 0.0
    %942 = vmatpush.msra.mxu0 0.0
    %943 = vmatpush.msra.mxu0 0.0
    %944 = vmatpush.msra.mxu0 0.0
    %945 = vmatpush.msra.mxu0 0.0
    %946 = vmatpush.msra.mxu0 0.0
    %947 = vmatpush.msra.mxu0 0.0
    %948 = vmatpush.msra.mxu0 0.0
    %949 = vmatpush.msra.mxu0 0.0
    %950 = vmatpush.msra.mxu0 0.0
    %951 = vmatpush.msra.mxu0 0.0
    %952 = vmatpush.msra.mxu0 0.0
    %953 = vmatpush.msra.mxu0 %v937
    %954 = vmatpush.msra.mxu0 %v812
    %955 = vmatmul.f32.gmra.mxu0 %v934
    %v956 = vpop.f32.mrf.mxu0
    %v957 = vadd.f32 0.0, %v956
    %958 = vdwg.mxu0
    %v959 = vadd.f32 %v929, %v957
    %s960 = scalar_lea.vmem %s3, 24
    %v961 = vld [vmem:[%s960] sm:$0xff]
    %v963 = vsel %vm877, %v961, 0
    %v966 = vsel %vm881, %v845, 0
    %968 = vmatpush.msra.mxu0 0.0
    %969 = vmatpush.msra.mxu0 0.0
    %970 = vmatpush.msra.mxu0 0.0
    %971 = vmatpush.msra.mxu0 0.0
    %972 = vmatpush.msra.mxu0 0.0
    %973 = vmatpush.msra.mxu0 0.0
    %974 = vmatpush.msra.mxu0 0.0
    %975 = vmatpush.msra.mxu0 0.0
    %976 = vmatpush.msra.mxu0 0.0
    %977 = vmatpush.msra.mxu0 0.0
    %978 = vmatpush.msra.mxu0 0.0
    %979 = vmatpush.msra.mxu0 0.0
    %980 = vmatpush.msra.mxu0 0.0
    %981 = vmatpush.msra.mxu0 0.0
    %982 = vmatpush.msra.mxu0 %v966
    %983 = vmatpush.msra.mxu0 %v813
    %984 = vmatmul.f32.gmra.mxu0 %v963
    %v985 = vpop.f32.mrf.mxu0
    %v986 = vadd.f32 0.0, %v985
    %987 = vdwg.mxu0
    %v988 = vadd.f32 %v959, %v986
    %s989 = scalar_lea.vmem %s3, 32
    %v990 = vld [vmem:[%s989] sm:$0xff]
    %v992 = vsel %vm877, %v990, 0
    %v995 = vsel %vm881, %v846, 0
    %997 = vmatpush.msra.mxu0 0.0
    %998 = vmatpush.msra.mxu0 0.0
    %999 = vmatpush.msra.mxu0 0.0
    %1000 = vmatpush.msra.mxu0 0.0
    %1001 = vmatpush.msra.mxu0 0.0
    %1002 = vmatpush.msra.mxu0 0.0
    %1003 = vmatpush.msra.mxu0 0.0
    %1004 = vmatpush.msra.mxu0 0.0
    %1005 = vmatpush.msra.mxu0 0.0
    %1006 = vmatpush.msra.mxu0 0.0
    %1007 = vmatpush.msra.mxu0 0.0
    %1008 = vmatpush.msra.mxu0 0.0
    %1009 = vmatpush.msra.mxu0 0.0
    %1010 = vmatpush.msra.mxu0 0.0
    %1011 = vmatpush.msra.mxu0 %v995
    %1012 = vmatpush.msra.mxu0 %v814
    %1013 = vmatmul.f32.gmra.mxu0 %v992
    %v1014 = vpop.f32.mrf.mxu0
    %v1015 = vadd.f32 0.0, %v1014
    %1016 = vdwg.mxu0
    %v1017 = vadd.f32 %v988, %v1015
    %s1018 = scalar_lea.vmem %s3, 40
    %v1019 = vld [vmem:[%s1018] sm:$0xff]
    %v1021 = vsel %vm877, %v1019, 0
    %v1024 = vsel %vm881, %v847, 0
    %1026 = vmatpush.msra.mxu0 0.0
    %1027 = vmatpush.msra.mxu0 0.0
    %1028 = vmatpush.msra.mxu0 0.0
    %1029 = vmatpush.msra.mxu0 0.0
    %1030 = vmatpush.msra.mxu0 0.0
    %1031 = vmatpush.msra.mxu0 0.0
    %1032 = vmatpush.msra.mxu0 0.0
    %1033 = vmatpush.msra.mxu0 0.0
    %1034 = vmatpush.msra.mxu0 0.0
    %1035 = vmatpush.msra.mxu0 0.0
    %1036 = vmatpush.msra.mxu0 0.0
    %1037 = vmatpush.msra.mxu0 0.0
    %1038 = vmatpush.msra.mxu0 0.0
    %1039 = vmatpush.msra.mxu0 0.0
    %1040 = vmatpush.msra.mxu0 %v1024
    %1041 = vmatpush.msra.mxu0 %v815
    %1042 = vmatmul.f32.gmra.mxu0 %v1021
    %v1043 = vpop.f32.mrf.mxu0
    %v1044 = vadd.f32 0.0, %v1043
    %1045 = vdwg.mxu0
    %v1046 = vadd.f32 %v1017, %v1044
    %s1047 = scalar_lea.vmem %s3, 48
    %v1048 = vld [vmem:[%s1047] sm:$0xff]
    %v1050 = vsel %vm877, %v1048, 0
    %v1053 = vsel %vm881, %v848, 0
    %1055 = vmatpush.msra.mxu0 0.0
    %1056 = vmatpush.msra.mxu0 0.0
    %1057 = vmatpush.msra.mxu0 0.0
    %1058 = vmatpush.msra.mxu0 0.0
    %1059 = vmatpush.msra.mxu0 0.0
    %1060 = vmatpush.msra.mxu0 0.0
    %1061 = vmatpush.msra.mxu0 0.0
    %1062 = vmatpush.msra.mxu0 0.0
    %1063 = vmatpush.msra.mxu0 0.0
    %1064 = vmatpush.msra.mxu0 0.0
    %1065 = vmatpush.msra.mxu0 0.0
    %1066 = vmatpush.msra.mxu0 0.0
    %1067 = vmatpush.msra.mxu0 0.0
    %1068 = vmatpush.msra.mxu0 0.0
    %1069 = vmatpush.msra.mxu0 %v1053
    %1070 = vmatpush.msra.mxu0 %v816
    %1071 = vmatmul.f32.gmra.mxu0 %v1050
    %v1072 = vpop.f32.mrf.mxu0
    %v1073 = vadd.f32 0.0, %v1072
    %1074 = vdwg.mxu0
    %v1075 = vadd.f32 %v1046, %v1073
    %s1076 = scalar_lea.vmem %s3, 56
    %v1077 = vld [vmem:[%s1076] sm:$0xff]
    %v1079 = vsel %vm877, %v1077, 0
    %v1082 = vsel %vm881, %v849, 0
    %1084 = vmatpush.msra.mxu0 0.0
    %1085 = vmatpush.msra.mxu0 0.0
    %1086 = vmatpush.msra.mxu0 0.0
    %1087 = vmatpush.msra.mxu0 0.0
    %1088 = vmatpush.msra.mxu0 0.0
    %1089 = vmatpush.msra.mxu0 0.0
    %1090 = vmatpush.msra.mxu0 0.0
    %1091 = vmatpush.msra.mxu0 0.0
    %1092 = vmatpush.msra.mxu0 0.0
    %1093 = vmatpush.msra.mxu0 0.0
    %1094 = vmatpush.msra.mxu0 0.0
    %1095 = vmatpush.msra.mxu0 0.0
    %1096 = vmatpush.msra.mxu0 0.0
    %1097 = vmatpush.msra.mxu0 0.0
    %1098 = vmatpush.msra.mxu0 %v1082
    %1099 = vmatpush.msra.mxu0 %v817
    %1100 = vmatmul.f32.gmra.mxu0 %v1079
    %v1101 = vpop.f32.mrf.mxu0
    %v1102 = vadd.f32 0.0, %v1101
    %1103 = vdwg.mxu0
    %v1104 = vadd.f32 %v1075, %v1102
    %s1105 = scalar_lea.vmem %s3, 64
    %v1106 = vld [vmem:[%s1105] sm:$0xff]
    %v1108 = vsel %vm877, %v1106, 0
    %v1111 = vsel %vm881, %v850, 0
    %1113 = vmatpush.msra.mxu0 0.0
    %1114 = vmatpush.msra.mxu0 0.0
    %1115 = vmatpush.msra.mxu0 0.0
    %1116 = vmatpush.msra.mxu0 0.0
    %1117 = vmatpush.msra.mxu0 0.0
    %1118 = vmatpush.msra.mxu0 0.0
    %1119 = vmatpush.msra.mxu0 0.0
    %1120 = vmatpush.msra.mxu0 0.0
    %1121 = vmatpush.msra.mxu0 0.0
    %1122 = vmatpush.msra.mxu0 0.0
    %1123 = vmatpush.msra.mxu0 0.0
    %1124 = vmatpush.msra.mxu0 0.0
    %1125 = vmatpush.msra.mxu0 0.0
    %1126 = vmatpush.msra.mxu0 0.0
    %1127 = vmatpush.msra.mxu0 %v1111
    %1128 = vmatpush.msra.mxu0 %v818
    %1129 = vmatmul.f32.gmra.mxu0 %v1108
    %v1130 = vpop.f32.mrf.mxu0
    %v1131 = vadd.f32 0.0, %v1130
    %1132 = vdwg.mxu0
    %v1133 = vadd.f32 %v1104, %v1131
    %s1134 = scalar_lea.vmem %s3, 72
    %v1135 = vld [vmem:[%s1134] sm:$0xff]
    %v1137 = vsel %vm877, %v1135, 0
    %v1140 = vsel %vm881, %v851, 0
    %1142 = vmatpush.msra.mxu0 0.0
    %1143 = vmatpush.msra.mxu0 0.0
    %1144 = vmatpush.msra.mxu0 0.0
    %1145 = vmatpush.msra.mxu0 0.0
    %1146 = vmatpush.msra.mxu0 0.0
    %1147 = vmatpush.msra.mxu0 0.0
    %1148 = vmatpush.msra.mxu0 0.0
    %1149 = vmatpush.msra.mxu0 0.0
    %1150 = vmatpush.msra.mxu0 0.0
    %1151 = vmatpush.msra.mxu0 0.0
    %1152 = vmatpush.msra.mxu0 0.0
    %1153 = vmatpush.msra.mxu0 0.0
    %1154 = vmatpush.msra.mxu0 0.0
    %1155 = vmatpush.msra.mxu0 0.0
    %1156 = vmatpush.msra.mxu0 %v1140
    %1157 = vmatpush.msra.mxu0 %v819
    %1158 = vmatmul.f32.gmra.mxu0 %v1137
    %v1159 = vpop.f32.mrf.mxu0
    %v1160 = vadd.f32 0.0, %v1159
    %1161 = vdwg.mxu0
    %v1162 = vadd.f32 %v1133, %v1160
    %s1163 = scalar_lea.vmem %s3, 80
    %v1164 = vld [vmem:[%s1163] sm:$0xff]
    %v1166 = vsel %vm877, %v1164, 0
    %v1169 = vsel %vm881, %v852, 0
    %1171 = vmatpush.msra.mxu0 0.0
    %1172 = vmatpush.msra.mxu0 0.0
    %1173 = vmatpush.msra.mxu0 0.0
    %1174 = vmatpush.msra.mxu0 0.0
    %1175 = vmatpush.msra.mxu0 0.0
    %1176 = vmatpush.msra.mxu0 0.0
    %1177 = vmatpush.msra.mxu0 0.0
    %1178 = vmatpush.msra.mxu0 0.0
    %1179 = vmatpush.msra.mxu0 0.0
    %1180 = vmatpush.msra.mxu0 0.0
    %1181 = vmatpush.msra.mxu0 0.0
    %1182 = vmatpush.msra.mxu0 0.0
    %1183 = vmatpush.msra.mxu0 0.0
    %1184 = vmatpush.msra.mxu0 0.0
    %1185 = vmatpush.msra.mxu0 %v1169
    %1186 = vmatpush.msra.mxu0 %v820
    %1187 = vmatmul.f32.gmra.mxu0 %v1166
    %v1188 = vpop.f32.mrf.mxu0
    %v1189 = vadd.f32 0.0, %v1188
    %1190 = vdwg.mxu0
    %v1191 = vadd.f32 %v1162, %v1189
    %s1192 = scalar_lea.vmem %s3, 88
    %v1193 = vld [vmem:[%s1192] sm:$0xff]
    %v1195 = vsel %vm877, %v1193, 0
    %v1198 = vsel %vm881, %v853, 0
    %1200 = vmatpush.msra.mxu0 0.0
    %1201 = vmatpush.msra.mxu0 0.0
    %1202 = vmatpush.msra.mxu0 0.0
    %1203 = vmatpush.msra.mxu0 0.0
    %1204 = vmatpush.msra.mxu0 0.0
    %1205 = vmatpush.msra.mxu0 0.0
    %1206 = vmatpush.msra.mxu0 0.0
    %1207 = vmatpush.msra.mxu0 0.0
    %1208 = vmatpush.msra.mxu0 0.0
    %1209 = vmatpush.msra.mxu0 0.0
    %1210 = vmatpush.msra.mxu0 0.0
    %1211 = vmatpush.msra.mxu0 0.0
    %1212 = vmatpush.msra.mxu0 0.0
    %1213 = vmatpush.msra.mxu0 0.0
    %1214 = vmatpush.msra.mxu0 %v1198
    %1215 = vmatpush.msra.mxu0 %v821
    %1216 = vmatmul.f32.gmra.mxu0 %v1195
    %v1217 = vpop.f32.mrf.mxu0
    %v1218 = vadd.f32 0.0, %v1217
    %1219 = vdwg.mxu0
    %v1220 = vadd.f32 %v1191, %v1218
    %s1221 = scalar_lea.vmem %s3, 96
    %v1222 = vld [vmem:[%s1221] sm:$0xff]
    %v1224 = vsel %vm877, %v1222, 0
    %v1227 = vsel %vm881, %v854, 0
    %1229 = vmatpush.msra.mxu0 0.0
    %1230 = vmatpush.msra.mxu0 0.0
    %1231 = vmatpush.msra.mxu0 0.0
    %1232 = vmatpush.msra.mxu0 0.0
    %1233 = vmatpush.msra.mxu0 0.0
    %1234 = vmatpush.msra.mxu0 0.0
    %1235 = vmatpush.msra.mxu0 0.0
    %1236 = vmatpush.msra.mxu0 0.0
    %1237 = vmatpush.msra.mxu0 0.0
    %1238 = vmatpush.msra.mxu0 0.0
    %1239 = vmatpush.msra.mxu0 0.0
    %1240 = vmatpush.msra.mxu0 0.0
    %1241 = vmatpush.msra.mxu0 0.0
    %1242 = vmatpush.msra.mxu0 0.0
    %1243 = vmatpush.msra.mxu0 %v1227
    %1244 = vmatpush.msra.mxu0 %v822
    %1245 = vmatmul.f32.gmra.mxu0 %v1224
    %v1246 = vpop.f32.mrf.mxu0
    %v1247 = vadd.f32 0.0, %v1246
    %1248 = vdwg.mxu0
    %v1249 = vadd.f32 %v1220, %v1247
    %s1250 = scalar_lea.vmem %s3, 104
    %v1251 = vld [vmem:[%s1250] sm:$0xff]
    %v1253 = vsel %vm877, %v1251, 0
    %v1256 = vsel %vm881, %v855, 0
    %1258 = vmatpush.msra.mxu0 0.0
    %1259 = vmatpush.msra.mxu0 0.0
    %1260 = vmatpush.msra.mxu0 0.0
    %1261 = vmatpush.msra.mxu0 0.0
    %1262 = vmatpush.msra.mxu0 0.0
    %1263 = vmatpush.msra.mxu0 0.0
    %1264 = vmatpush.msra.mxu0 0.0
    %1265 = vmatpush.msra.mxu0 0.0
    %1266 = vmatpush.msra.mxu0 0.0
    %1267 = vmatpush.msra.mxu0 0.0
    %1268 = vmatpush.msra.mxu0 0.0
    %1269 = vmatpush.msra.mxu0 0.0
    %1270 = vmatpush.msra.mxu0 0.0
    %1271 = vmatpush.msra.mxu0 0.0
    %1272 = vmatpush.msra.mxu0 %v1256
    %1273 = vmatpush.msra.mxu0 %v823
    %1274 = vmatmul.f32.gmra.mxu0 %v1253
    %v1275 = vpop.f32.mrf.mxu0
    %v1276 = vadd.f32 0.0, %v1275
    %1277 = vdwg.mxu0
    %v1278 = vadd.f32 %v1249, %v1276
    %s1279 = scalar_lea.vmem %s3, 112
    %v1280 = vld [vmem:[%s1279] sm:$0xff]
    %v1282 = vsel %vm877, %v1280, 0
    %v1285 = vsel %vm881, %v856, 0
    %1287 = vmatpush.msra.mxu0 0.0
    %1288 = vmatpush.msra.mxu0 0.0
    %1289 = vmatpush.msra.mxu0 0.0
    %1290 = vmatpush.msra.mxu0 0.0
    %1291 = vmatpush.msra.mxu0 0.0
    %1292 = vmatpush.msra.mxu0 0.0
    %1293 = vmatpush.msra.mxu0 0.0
    %1294 = vmatpush.msra.mxu0 0.0
    %1295 = vmatpush.msra.mxu0 0.0
    %1296 = vmatpush.msra.mxu0 0.0
    %1297 = vmatpush.msra.mxu0 0.0
    %1298 = vmatpush.msra.mxu0 0.0
    %1299 = vmatpush.msra.mxu0 0.0
    %1300 = vmatpush.msra.mxu0 0.0
    %1301 = vmatpush.msra.mxu0 %v1285
    %1302 = vmatpush.msra.mxu0 %v824
    %1303 = vmatmul.f32.gmra.mxu0 %v1282
    %v1304 = vpop.f32.mrf.mxu0
    %v1305 = vadd.f32 0.0, %v1304
    %1306 = vdwg.mxu0
    %v1307 = vadd.f32 %v1278, %v1305
    %s1308 = scalar_lea.vmem %s3, 120
    %v1309 = vld [vmem:[%s1308] sm:$0xff]
    %v1311 = vsel %vm877, %v1309, 0
    %v1314 = vsel %vm881, %v857, 0
    %1316 = vmatpush.msra.mxu0 0.0
    %1317 = vmatpush.msra.mxu0 0.0
    %1318 = vmatpush.msra.mxu0 0.0
    %1319 = vmatpush.msra.mxu0 0.0
    %1320 = vmatpush.msra.mxu0 0.0
    %1321 = vmatpush.msra.mxu0 0.0
    %1322 = vmatpush.msra.mxu0 0.0
    %1323 = vmatpush.msra.mxu0 0.0
    %1324 = vmatpush.msra.mxu0 0.0
    %1325 = vmatpush.msra.mxu0 0.0
    %1326 = vmatpush.msra.mxu0 0.0
    %1327 = vmatpush.msra.mxu0 0.0
    %1328 = vmatpush.msra.mxu0 0.0
    %1329 = vmatpush.msra.mxu0 0.0
    %1330 = vmatpush.msra.mxu0 %v1314
    %1331 = vmatpush.msra.mxu0 %v825
    %1332 = vmatmul.f32.gmra.mxu0 %v1311
    %v1333 = vpop.f32.mrf.mxu0
    %v1334 = vadd.f32 0.0, %v1333
    %1335 = vdwg.mxu0
    %v1336 = vadd.f32 %v1307, %v1334
    %s1337 = scalar_lea.vmem %s3, 128
    %v1338 = vld [vmem:[%s1337] sm:$0xff]
    %v1340 = vsel %vm877, %v1338, 0
    %v1343 = vsel %vm881, %v858, 0
    %1345 = vmatpush.msra.mxu0 0.0
    %1346 = vmatpush.msra.mxu0 0.0
    %1347 = vmatpush.msra.mxu0 0.0
    %1348 = vmatpush.msra.mxu0 0.0
    %1349 = vmatpush.msra.mxu0 0.0
    %1350 = vmatpush.msra.mxu0 0.0
    %1351 = vmatpush.msra.mxu0 0.0
    %1352 = vmatpush.msra.mxu0 0.0
    %1353 = vmatpush.msra.mxu0 0.0
    %1354 = vmatpush.msra.mxu0 0.0
    %1355 = vmatpush.msra.mxu0 0.0
    %1356 = vmatpush.msra.mxu0 0.0
    %1357 = vmatpush.msra.mxu0 0.0
    %1358 = vmatpush.msra.mxu0 0.0
    %1359 = vmatpush.msra.mxu0 %v1343
    %1360 = vmatpush.msra.mxu0 %v826
    %1361 = vmatmul.f32.gmra.mxu0 %v1340
    %v1362 = vpop.f32.mrf.mxu0
    %v1363 = vadd.f32 0.0, %v1362
    %1364 = vdwg.mxu0
    %v1365 = vadd.f32 %v1336, %v1363
    %s1366 = scalar_lea.vmem %s3, 136
    %v1367 = vld [vmem:[%s1366] sm:$0xff]
    %v1369 = vsel %vm877, %v1367, 0
    %v1372 = vsel %vm881, %v859, 0
    %1374 = vmatpush.msra.mxu0 0.0
    %1375 = vmatpush.msra.mxu0 0.0
    %1376 = vmatpush.msra.mxu0 0.0
    %1377 = vmatpush.msra.mxu0 0.0
    %1378 = vmatpush.msra.mxu0 0.0
    %1379 = vmatpush.msra.mxu0 0.0
    %1380 = vmatpush.msra.mxu0 0.0
    %1381 = vmatpush.msra.mxu0 0.0
    %1382 = vmatpush.msra.mxu0 0.0
    %1383 = vmatpush.msra.mxu0 0.0
    %1384 = vmatpush.msra.mxu0 0.0
    %1385 = vmatpush.msra.mxu0 0.0
    %1386 = vmatpush.msra.mxu0 0.0
    %1387 = vmatpush.msra.mxu0 0.0
    %1388 = vmatpush.msra.mxu0 %v1372
    %1389 = vmatpush.msra.mxu0 %v827
    %1390 = vmatmul.f32.gmra.mxu0 %v1369
    %v1391 = vpop.f32.mrf.mxu0
    %v1392 = vadd.f32 0.0, %v1391
    %1393 = vdwg.mxu0
    %v1394 = vadd.f32 %v1365, %v1392
    %s1395 = scalar_lea.vmem %s3, 144
    %v1396 = vld [vmem:[%s1395] sm:$0xff]
    %v1398 = vsel %vm877, %v1396, 0
    %v1401 = vsel %vm881, %v860, 0
    %1403 = vmatpush.msra.mxu0 0.0
    %1404 = vmatpush.msra.mxu0 0.0
    %1405 = vmatpush.msra.mxu0 0.0
    %1406 = vmatpush.msra.mxu0 0.0
    %1407 = vmatpush.msra.mxu0 0.0
    %1408 = vmatpush.msra.mxu0 0.0
    %1409 = vmatpush.msra.mxu0 0.0
    %1410 = vmatpush.msra.mxu0 0.0
    %1411 = vmatpush.msra.mxu0 0.0
    %1412 = vmatpush.msra.mxu0 0.0
    %1413 = vmatpush.msra.mxu0 0.0
    %1414 = vmatpush.msra.mxu0 0.0
    %1415 = vmatpush.msra.mxu0 0.0
    %1416 = vmatpush.msra.mxu0 0.0
    %1417 = vmatpush.msra.mxu0 %v1401
    %1418 = vmatpush.msra.mxu0 %v828
    %1419 = vmatmul.f32.gmra.mxu0 %v1398
    %v1420 = vpop.f32.mrf.mxu0
    %v1421 = vadd.f32 0.0, %v1420
    %1422 = vdwg.mxu0
    %v1423 = vadd.f32 %v1394, %v1421
    %s1424 = scalar_lea.vmem %s3, 152
    %v1425 = vld [vmem:[%s1424] sm:$0xff]
    %v1427 = vsel %vm877, %v1425, 0
    %v1430 = vsel %vm881, %v861, 0
    %1432 = vmatpush.msra.mxu0 0.0
    %1433 = vmatpush.msra.mxu0 0.0
    %1434 = vmatpush.msra.mxu0 0.0
    %1435 = vmatpush.msra.mxu0 0.0
    %1436 = vmatpush.msra.mxu0 0.0
    %1437 = vmatpush.msra.mxu0 0.0
    %1438 = vmatpush.msra.mxu0 0.0
    %1439 = vmatpush.msra.mxu0 0.0
    %1440 = vmatpush.msra.mxu0 0.0
    %1441 = vmatpush.msra.mxu0 0.0
    %1442 = vmatpush.msra.mxu0 0.0
    %1443 = vmatpush.msra.mxu0 0.0
    %1444 = vmatpush.msra.mxu0 0.0
    %1445 = vmatpush.msra.mxu0 0.0
    %1446 = vmatpush.msra.mxu0 %v1430
    %1447 = vmatpush.msra.mxu0 %v829
    %1448 = vmatmul.f32.gmra.mxu0 %v1427
    %v1449 = vpop.f32.mrf.mxu0
    %v1450 = vadd.f32 0.0, %v1449
    %1451 = vdwg.mxu0
    %v1452 = vadd.f32 %v1423, %v1450
    %s1453 = scalar_lea.vmem %s3, 160
    %v1454 = vld [vmem:[%s1453] sm:$0xff]
    %v1456 = vsel %vm877, %v1454, 0
    %v1459 = vsel %vm881, %v862, 0
    %1461 = vmatpush.msra.mxu0 0.0
    %1462 = vmatpush.msra.mxu0 0.0
    %1463 = vmatpush.msra.mxu0 0.0
    %1464 = vmatpush.msra.mxu0 0.0
    %1465 = vmatpush.msra.mxu0 0.0
    %1466 = vmatpush.msra.mxu0 0.0
    %1467 = vmatpush.msra.mxu0 0.0
    %1468 = vmatpush.msra.mxu0 0.0
    %1469 = vmatpush.msra.mxu0 0.0
    %1470 = vmatpush.msra.mxu0 0.0
    %1471 = vmatpush.msra.mxu0 0.0
    %1472 = vmatpush.msra.mxu0 0.0
    %1473 = vmatpush.msra.mxu0 0.0
    %1474 = vmatpush.msra.mxu0 0.0
    %1475 = vmatpush.msra.mxu0 %v1459
    %1476 = vmatpush.msra.mxu0 %v830
    %1477 = vmatmul.f32.gmra.mxu0 %v1456
    %v1478 = vpop.f32.mrf.mxu0
    %v1479 = vadd.f32 0.0, %v1478
    %1480 = vdwg.mxu0
    %v1481 = vadd.f32 %v1452, %v1479
    %s1482 = scalar_lea.vmem %s3, 168
    %v1483 = vld [vmem:[%s1482] sm:$0xff]
    %v1485 = vsel %vm877, %v1483, 0
    %v1488 = vsel %vm881, %v863, 0
    %1490 = vmatpush.msra.mxu0 0.0
    %1491 = vmatpush.msra.mxu0 0.0
    %1492 = vmatpush.msra.mxu0 0.0
    %1493 = vmatpush.msra.mxu0 0.0
    %1494 = vmatpush.msra.mxu0 0.0
    %1495 = vmatpush.msra.mxu0 0.0
    %1496 = vmatpush.msra.mxu0 0.0
    %1497 = vmatpush.msra.mxu0 0.0
    %1498 = vmatpush.msra.mxu0 0.0
    %1499 = vmatpush.msra.mxu0 0.0
    %1500 = vmatpush.msra.mxu0 0.0
    %1501 = vmatpush.msra.mxu0 0.0
    %1502 = vmatpush.msra.mxu0 0.0
    %1503 = vmatpush.msra.mxu0 0.0
    %1504 = vmatpush.msra.mxu0 %v1488
    %1505 = vmatpush.msra.mxu0 %v831
    %1506 = vmatmul.f32.gmra.mxu0 %v1485
    %v1507 = vpop.f32.mrf.mxu0
    %v1508 = vadd.f32 0.0, %v1507
    %1509 = vdwg.mxu0
    %v1510 = vadd.f32 %v1481, %v1508
    %s1511 = scalar_lea.vmem %s3, 176
    %v1512 = vld [vmem:[%s1511] sm:$0xff]
    %v1514 = vsel %vm877, %v1512, 0
    %v1517 = vsel %vm881, %v864, 0
    %1519 = vmatpush.msra.mxu0 0.0
    %1520 = vmatpush.msra.mxu0 0.0
    %1521 = vmatpush.msra.mxu0 0.0
    %1522 = vmatpush.msra.mxu0 0.0
    %1523 = vmatpush.msra.mxu0 0.0
    %1524 = vmatpush.msra.mxu0 0.0
    %1525 = vmatpush.msra.mxu0 0.0
    %1526 = vmatpush.msra.mxu0 0.0
    %1527 = vmatpush.msra.mxu0 0.0
    %1528 = vmatpush.msra.mxu0 0.0
    %1529 = vmatpush.msra.mxu0 0.0
    %1530 = vmatpush.msra.mxu0 0.0
    %1531 = vmatpush.msra.mxu0 0.0
    %1532 = vmatpush.msra.mxu0 0.0
    %1533 = vmatpush.msra.mxu0 %v1517
    %1534 = vmatpush.msra.mxu0 %v832
    %1535 = vmatmul.f32.gmra.mxu0 %v1514
    %v1536 = vpop.f32.mrf.mxu0
    %v1537 = vadd.f32 0.0, %v1536
    %1538 = vdwg.mxu0
    %v1539 = vadd.f32 %v1510, %v1537
    %s1540 = scalar_lea.vmem %s3, 184
    %v1541 = vld [vmem:[%s1540] sm:$0xff]
    %v1543 = vsel %vm877, %v1541, 0
    %v1546 = vsel %vm881, %v865, 0
    %1548 = vmatpush.msra.mxu0 0.0
    %1549 = vmatpush.msra.mxu0 0.0
    %1550 = vmatpush.msra.mxu0 0.0
    %1551 = vmatpush.msra.mxu0 0.0
    %1552 = vmatpush.msra.mxu0 0.0
    %1553 = vmatpush.msra.mxu0 0.0
    %1554 = vmatpush.msra.mxu0 0.0
    %1555 = vmatpush.msra.mxu0 0.0
    %1556 = vmatpush.msra.mxu0 0.0
    %1557 = vmatpush.msra.mxu0 0.0
    %1558 = vmatpush.msra.mxu0 0.0
    %1559 = vmatpush.msra.mxu0 0.0
    %1560 = vmatpush.msra.mxu0 0.0
    %1561 = vmatpush.msra.mxu0 0.0
    %1562 = vmatpush.msra.mxu0 %v1546
    %1563 = vmatpush.msra.mxu0 %v833
    %1564 = vmatmul.f32.gmra.mxu0 %v1543
    %v1565 = vpop.f32.mrf.mxu0
    %v1566 = vadd.f32 0.0, %v1565
    %1567 = vdwg.mxu0
    %v1568 = vadd.f32 %v1539, %v1566
    %s1569 = scalar_lea.vmem %s3, 192
    %v1570 = vld [vmem:[%s1569] sm:$0xff]
    %v1572 = vsel %vm877, %v1570, 0
    %v1575 = vsel %vm881, %v866, 0
    %1577 = vmatpush.msra.mxu0 0.0
    %1578 = vmatpush.msra.mxu0 0.0
    %1579 = vmatpush.msra.mxu0 0.0
    %1580 = vmatpush.msra.mxu0 0.0
    %1581 = vmatpush.msra.mxu0 0.0
    %1582 = vmatpush.msra.mxu0 0.0
    %1583 = vmatpush.msra.mxu0 0.0
    %1584 = vmatpush.msra.mxu0 0.0
    %1585 = vmatpush.msra.mxu0 0.0
    %1586 = vmatpush.msra.mxu0 0.0
    %1587 = vmatpush.msra.mxu0 0.0
    %1588 = vmatpush.msra.mxu0 0.0
    %1589 = vmatpush.msra.mxu0 0.0
    %1590 = vmatpush.msra.mxu0 0.0
    %1591 = vmatpush.msra.mxu0 %v1575
    %1592 = vmatpush.msra.mxu0 %v834
    %1593 = vmatmul.f32.gmra.mxu0 %v1572
    %v1594 = vpop.f32.mrf.mxu0
    %v1595 = vadd.f32 0.0, %v1594
    %1596 = vdwg.mxu0
    %v1597 = vadd.f32 %v1568, %v1595
    %s1598 = scalar_lea.vmem %s3, 200
    %v1599 = vld [vmem:[%s1598] sm:$0xff]
    %v1601 = vsel %vm877, %v1599, 0
    %v1604 = vsel %vm881, %v867, 0
    %1606 = vmatpush.msra.mxu0 0.0
    %1607 = vmatpush.msra.mxu0 0.0
    %1608 = vmatpush.msra.mxu0 0.0
    %1609 = vmatpush.msra.mxu0 0.0
    %1610 = vmatpush.msra.mxu0 0.0
    %1611 = vmatpush.msra.mxu0 0.0
    %1612 = vmatpush.msra.mxu0 0.0
    %1613 = vmatpush.msra.mxu0 0.0
    %1614 = vmatpush.msra.mxu0 0.0
    %1615 = vmatpush.msra.mxu0 0.0
    %1616 = vmatpush.msra.mxu0 0.0
    %1617 = vmatpush.msra.mxu0 0.0
    %1618 = vmatpush.msra.mxu0 0.0
    %1619 = vmatpush.msra.mxu0 0.0
    %1620 = vmatpush.msra.mxu0 %v1604
    %1621 = vmatpush.msra.mxu0 %v835
    %1622 = vmatmul.f32.gmra.mxu0 %v1601
    %v1623 = vpop.f32.mrf.mxu0
    %v1624 = vadd.f32 0.0, %v1623
    %1625 = vdwg.mxu0
    %v1626 = vadd.f32 %v1597, %v1624
    %s1627 = scalar_lea.vmem %s3, 208
    %v1628 = vld [vmem:[%s1627] sm:$0xff]
    %v1630 = vsel %vm877, %v1628, 0
    %v1633 = vsel %vm881, %v868, 0
    %1635 = vmatpush.msra.mxu0 0.0
    %1636 = vmatpush.msra.mxu0 0.0
    %1637 = vmatpush.msra.mxu0 0.0
    %1638 = vmatpush.msra.mxu0 0.0
    %1639 = vmatpush.msra.mxu0 0.0
    %1640 = vmatpush.msra.mxu0 0.0
    %1641 = vmatpush.msra.mxu0 0.0
    %1642 = vmatpush.msra.mxu0 0.0
    %1643 = vmatpush.msra.mxu0 0.0
    %1644 = vmatpush.msra.mxu0 0.0
    %1645 = vmatpush.msra.mxu0 0.0
    %1646 = vmatpush.msra.mxu0 0.0
    %1647 = vmatpush.msra.mxu0 0.0
    %1648 = vmatpush.msra.mxu0 0.0
    %1649 = vmatpush.msra.mxu0 %v1633
    %1650 = vmatpush.msra.mxu0 %v836
    %1651 = vmatmul.f32.gmra.mxu0 %v1630
    %v1652 = vpop.f32.mrf.mxu0
    %v1653 = vadd.f32 0.0, %v1652
    %1654 = vdwg.mxu0
    %v1655 = vadd.f32 %v1626, %v1653
    %s1656 = scalar_lea.vmem %s3, 216
    %v1657 = vld [vmem:[%s1656] sm:$0xff]
    %v1659 = vsel %vm877, %v1657, 0
    %v1662 = vsel %vm881, %v869, 0
    %1664 = vmatpush.msra.mxu0 0.0
    %1665 = vmatpush.msra.mxu0 0.0
    %1666 = vmatpush.msra.mxu0 0.0
    %1667 = vmatpush.msra.mxu0 0.0
    %1668 = vmatpush.msra.mxu0 0.0
    %1669 = vmatpush.msra.mxu0 0.0
    %1670 = vmatpush.msra.mxu0 0.0
    %1671 = vmatpush.msra.mxu0 0.0
    %1672 = vmatpush.msra.mxu0 0.0
    %1673 = vmatpush.msra.mxu0 0.0
    %1674 = vmatpush.msra.mxu0 0.0
    %1675 = vmatpush.msra.mxu0 0.0
    %1676 = vmatpush.msra.mxu0 0.0
    %1677 = vmatpush.msra.mxu0 0.0
    %1678 = vmatpush.msra.mxu0 %v1662
    %1679 = vmatpush.msra.mxu0 %v837
    %1680 = vmatmul.f32.gmra.mxu0 %v1659
    %v1681 = vpop.f32.mrf.mxu0
    %v1682 = vadd.f32 0.0, %v1681
    %1683 = vdwg.mxu0
    %v1684 = vadd.f32 %v1655, %v1682
    %s1685 = scalar_lea.vmem %s3, 224
    %v1686 = vld [vmem:[%s1685] sm:$0xff]
    %v1688 = vsel %vm877, %v1686, 0
    %v1691 = vsel %vm881, %v870, 0
    %1693 = vmatpush.msra.mxu0 0.0
    %1694 = vmatpush.msra.mxu0 0.0
    %1695 = vmatpush.msra.mxu0 0.0
    %1696 = vmatpush.msra.mxu0 0.0
    %1697 = vmatpush.msra.mxu0 0.0
    %1698 = vmatpush.msra.mxu0 0.0
    %1699 = vmatpush.msra.mxu0 0.0
    %1700 = vmatpush.msra.mxu0 0.0
    %1701 = vmatpush.msra.mxu0 0.0
    %1702 = vmatpush.msra.mxu0 0.0
    %1703 = vmatpush.msra.mxu0 0.0
    %1704 = vmatpush.msra.mxu0 0.0
    %1705 = vmatpush.msra.mxu0 0.0
    %1706 = vmatpush.msra.mxu0 0.0
    %1707 = vmatpush.msra.mxu0 %v1691
    %1708 = vmatpush.msra.mxu0 %v838
    %1709 = vmatmul.f32.gmra.mxu0 %v1688
    %v1710 = vpop.f32.mrf.mxu0
    %v1711 = vadd.f32 0.0, %v1710
    %1712 = vdwg.mxu0
    %v1713 = vadd.f32 %v1684, %v1711
    %s1714 = scalar_lea.vmem %s3, 232
    %v1715 = vld [vmem:[%s1714] sm:$0xff]
    %v1717 = vsel %vm877, %v1715, 0
    %v1720 = vsel %vm881, %v871, 0
    %1722 = vmatpush.msra.mxu0 0.0
    %1723 = vmatpush.msra.mxu0 0.0
    %1724 = vmatpush.msra.mxu0 0.0
    %1725 = vmatpush.msra.mxu0 0.0
    %1726 = vmatpush.msra.mxu0 0.0
    %1727 = vmatpush.msra.mxu0 0.0
    %1728 = vmatpush.msra.mxu0 0.0
    %1729 = vmatpush.msra.mxu0 0.0
    %1730 = vmatpush.msra.mxu0 0.0
    %1731 = vmatpush.msra.mxu0 0.0
    %1732 = vmatpush.msra.mxu0 0.0
    %1733 = vmatpush.msra.mxu0 0.0
    %1734 = vmatpush.msra.mxu0 0.0
    %1735 = vmatpush.msra.mxu0 0.0
    %1736 = vmatpush.msra.mxu0 %v1720
    %1737 = vmatpush.msra.mxu0 %v839
    %1738 = vmatmul.f32.gmra.mxu0 %v1717
    %v1739 = vpop.f32.mrf.mxu0
    %v1740 = vadd.f32 0.0, %v1739
    %1741 = vdwg.mxu0
    %v1742 = vadd.f32 %v1713, %v1740
    %s1743 = scalar_lea.vmem %s3, 240
    %v1744 = vld [vmem:[%s1743] sm:$0xff]
    %v1746 = vsel %vm877, %v1744, 0
    %v1749 = vsel %vm881, %v872, 0
    %1751 = vmatpush.msra.mxu0 0.0
    %1752 = vmatpush.msra.mxu0 0.0
    %1753 = vmatpush.msra.mxu0 0.0
    %1754 = vmatpush.msra.mxu0 0.0
    %1755 = vmatpush.msra.mxu0 0.0
    %1756 = vmatpush.msra.mxu0 0.0
    %1757 = vmatpush.msra.mxu0 0.0
    %1758 = vmatpush.msra.mxu0 0.0
    %1759 = vmatpush.msra.mxu0 0.0
    %1760 = vmatpush.msra.mxu0 0.0
    %1761 = vmatpush.msra.mxu0 0.0
    %1762 = vmatpush.msra.mxu0 0.0
    %1763 = vmatpush.msra.mxu0 0.0
    %1764 = vmatpush.msra.mxu0 0.0
    %1765 = vmatpush.msra.mxu0 %v1749
    %1766 = vmatpush.msra.mxu0 %v840
    %1767 = vmatmul.f32.gmra.mxu0 %v1746
    %v1768 = vpop.f32.mrf.mxu0
    %v1769 = vadd.f32 0.0, %v1768
    %1770 = vdwg.mxu0
    %v1771 = vadd.f32 %v1742, %v1769
    %s1772 = scalar_lea.vmem %s3, 248
    %v1773 = vld [vmem:[%s1772] sm:$0xff]
    %v1775 = vsel %vm877, %v1773, 0
    %v1778 = vsel %vm881, %v873, 0
    %1780 = vmatpush.msra.mxu0 0.0
    %1781 = vmatpush.msra.mxu0 0.0
    %1782 = vmatpush.msra.mxu0 0.0
    %1783 = vmatpush.msra.mxu0 0.0
    %1784 = vmatpush.msra.mxu0 0.0
    %1785 = vmatpush.msra.mxu0 0.0
    %1786 = vmatpush.msra.mxu0 0.0
    %1787 = vmatpush.msra.mxu0 0.0
    %1788 = vmatpush.msra.mxu0 0.0
    %1789 = vmatpush.msra.mxu0 0.0
    %1790 = vmatpush.msra.mxu0 0.0
    %1791 = vmatpush.msra.mxu0 0.0
    %1792 = vmatpush.msra.mxu0 0.0
    %1793 = vmatpush.msra.mxu0 0.0
    %1794 = vmatpush.msra.mxu0 %v1778
    %1795 = vmatpush.msra.mxu0 %v841
    %1796 = vmatmul.f32.gmra.mxu0 %v1775
    %v1797 = vpop.f32.mrf.mxu0
    %v1798 = vadd.f32 0.0, %v1797
    %1799 = vdwg.mxu0
    %v1800 = vadd.f32 %v1771, %v1798
    %v1801 = vld [vmem:[%s4] sm:$0xff]
    %1803 = vset.pattern.permute.xlu0 0
    %1804 = vperm.xlu0 %1803, %v1801
    %v1805 = vpop.permute.xlu0 %1804
    %v1807 = vadd.f32 %v1800, %v1805
    %1808 = vst [vmem:[#allocation2] sm:$0xff] %v1807
    // Predicated region
    $region22: #{tpu_custom_call.1} parent=1 // pred_check
      _
    $region23: #{tpu_custom_call.1} parent=1 // pred_check_branch
      %1810 = sbr.rel (0) target = $region25
    $region24: #{tpu_custom_call.1} parent=1 // pred_region
      %1812 = vsyncadd [#allocation3], 0
      %s1814 = sshll.u32 [#allocation2], 4
      %s1815 = int_to_ptr.vmem [resolvable:$true] %s1814
      %s1816 = sshll.u32 %s5, 4
      %s1817 = int_to_ptr.hbm [resolvable:$true] %s1816
      %1819 = dma.vmem_to_hbm [thread:$0]  %s1815, 128, %s1817, [#allocation3]
    $region25: #{tpu_custom_call.1} parent=1 // pred_fallthru
      _
    // Predicated region
    $region26: #{tpu_custom_call.1} parent=1 // pred_check
      _
    $region27: #{tpu_custom_call.1} parent=1 // pred_check_branch
      %1821 = sbr.rel (0) target = $region29
    $region28: #{tpu_custom_call.1} parent=1 // pred_region
      %1823 = dma.done [#allocation3], 128
    $region29: #{tpu_custom_call.1} parent=1 // pred_fallthru
      _
    %1824 = vsyncpa [#allocation3], 1

</llo_original>
